<compile_context>
chip_gen: v7x
topology: tpu7x:2x2x1
jax: 0.10.0
libtpu: 0.0.40
codegen_flags: <defaults>
</compile_context>

<pallas_src>
import functools

import jax
import jax.numpy as jnp
from jax.experimental import pallas as pl
from jax.experimental.pallas import tpu as pltpu

LANE = 128
SUBL_BF16 = 16            # one bf16 vreg tile is (16, 128)


def _round_up(n, m):
    return ((n + m - 1) // m) * m


def _slab_layout(input_dim, H, n_layers):
    """Row offsets of each weight block inside the single bf16 slab.

    Sections are aligned to 16 rows so every slice starts on a bf16 tile
    boundary (no relayout copies when slicing the loaded slab).
    """
    w_ih_offs = [0]
    r = _round_up(input_dim, SUBL_BF16)
    d0p = r
    w_hh_offs = [r]
    r += _round_up(H, SUBL_BF16)
    for _ in range(1, n_layers):
        w_ih_offs.append(r)
        r += _round_up(H, SUBL_BF16)
        w_hh_offs.append(r)
        r += _round_up(H, SUBL_BF16)
    fc_off = r
    r += _round_up(H, SUBL_BF16)
    return {"w_ih": w_ih_offs, "w_hh": w_hh_offs, "fc": fc_off,
            "rows": r, "d0p": d0p}


# ----------------------------- fused kernel ----------------------------------

def _make_fused_lstm_kernel(T, B8, H, n_layers, layout):
    D0p = layout["d0p"]

    def kernel(x_ref, w_ref, b_ref, out_ref):
        COLS = w_ref.shape[1]                      # == 4*H (and >= output_dim)
        w = w_ref[...]                             # (rows, 128) bf16, tiny
        x = x_ref[...].astype(jnp.bfloat16)        # (T*B8, D0p)

        # ---- hoisted input projection for layer 0, ALL timesteps at once ----
        w_ih0 = w[0:D0p, :]
        proj0 = (jnp.dot(x, w_ih0, preferred_element_type=jnp.float32)
                 + b_ref[0:1, :])                  # (T*B8, COLS) f32

        # ---- per-layer weight slices + hoisted bias broadcasts ----
        w_hh = [w[layout["w_hh"][l]:layout["w_hh"][l] + H, :]
                for l in range(n_layers)]
        w_ih = [None] + [w[layout["w_ih"][l]:layout["w_ih"][l] + H, :]
                         for l in range(1, n_layers)]
        w_fc = w[layout["fc"]:layout["fc"] + H, :]
        bias_b = [None] + [jnp.broadcast_to(b_ref[l:l + 1, :], (B8, COLS))
                           for l in range(1, n_layers)]

        # ---- wavefront recurrence over (layer, time) ----
        h = [jnp.zeros((B8, H), jnp.float32) for _ in range(n_layers)]
        c = [jnp.zeros((B8, H), jnp.float32) for _ in range(n_layers)]
        for s in range(T + n_layers - 1):          # static unroll
            updates = []
            for l in range(n_layers):
                t = s - l
                if t < 0 or t >= T:
                    continue
                rec = jnp.dot(h[l].astype(jnp.bfloat16), w_hh[l],
                              preferred_element_type=jnp.float32)
                if l == 0:
                    pre = proj0[t * B8:(t + 1) * B8, :] + rec
                else:
                    inp = jnp.dot(h[l - 1].astype(jnp.bfloat16), w_ih[l],
                                  preferred_element_type=jnp.float32)
                    pre = bias_b[l] + inp + rec
                # torch gate order: i, f, g, o — static 32-lane slices.
                i_g = jax.nn.sigmoid(pre[:, 0 * H:1 * H])
                f_g = jax.nn.sigmoid(pre[:, 1 * H:2 * H])
                g_g = jnp.tanh(pre[:, 2 * H:3 * H])
                o_g = jax.nn.sigmoid(pre[:, 3 * H:4 * H])
                c_new = f_g * c[l] + i_g * g_g
                h_new = o_g * jnp.tanh(c_new)
                updates.append((l, h_new, c_new))
            # Deferred state update: every cell above reads only step s-1 state,
            # so all (l, t) cells within this wavefront step are independent.
            for l, h_new, c_new in updates:
                h[l], c[l] = h_new, c_new

        # ---- fused final Linear on the last layer's final hidden state ----
        out_ref[...] = (jnp.dot(h[n_layers - 1].astype(jnp.bfloat16), w_fc,
                                preferred_element_type=jnp.float32)
                        + b_ref[n_layers:n_layers + 1, :])

    return kernel


# ------------------------------- wrapper --------------------------------------

@functools.partial(jax.jit,
                   static_argnames=("hidden_dim", "n_layers", "output_dim"))
def lstm_forward(kparams, x, *, hidden_dim, n_layers, output_dim):
    """x: (B, T, input_dim) batch_first like the PyTorch module -> (B, output_dim)."""
    B, T, D = x.shape
    H = hidden_dim
    layout = _slab_layout(D, H, n_layers)
    D0p = layout["d0p"]
    B8 = _round_up(max(B, 8), 8)
    w_slab = kparams["w_slab"]
    b_slab = kparams["b_slab"]
    COLS = w_slab.shape[1]

    # time-major, batch padded to a full sublane tile, input cols zero-padded.
    x_tm = jnp.transpose(x, (1, 0, 2)).astype(jnp.float32)          # (T, B, D)
    x_tm = jnp.pad(x_tm, ((0, 0), (0, B8 - B), (0, D0p - D)))
    x2 = x_tm.reshape(T * B8, D0p)

    out_pad = pl.pallas_call(
        _make_fused_lstm_kernel(T, B8, H, n_layers, layout),
        out_shape=jax.ShapeDtypeStruct((B8, COLS), jnp.float32),
        in_specs=[pl.BlockSpec((T * B8, D0p), lambda: (0, 0)),
                  pl.BlockSpec(w_slab.shape, lambda: (0, 0)),
                  pl.BlockSpec(b_slab.shape, lambda: (0, 0))],
        out_specs=pl.BlockSpec((B8, COLS), lambda: (0, 0)),
        compiler_params=pltpu.CompilerParams(
            vmem_limit_bytes=32 * 1024 * 1024,      # explicit budget (v7x-safe)
        ),
    )(x2, w_slab, b_slab)
    return out_pad[:B, :output_dim]


# ------------------------------ parameters ------------------------------------

def init_lstm_params(key, input_dim, hidden_dim, n_layers, output_dim):
    """Returns (kernel_params, raw_params).

    raw:    torch.nn.LSTM / nn.Linear layout (transposed), f32.
    kernel: one bf16 weight slab (rows, 128) + one f32 bias slab.
    """
    H = hidden_dim
    # TODO(synk): tile the gate / output lane dimension for 4*H > 128.
    assert 4 * H <= LANE and output_dim <= LANE
    layout = _slab_layout(input_dim, H, n_layers)
    COLS = LANE
    bound = 1.0 / float(H) ** 0.5

    w_slab = jnp.zeros((layout["rows"], COLS), jnp.float32)
    b_slab = jnp.zeros((n_layers + 1, COLS), jnp.float32)
    raw = {"layers": []}
    for l in range(n_layers):
        D_l = input_dim if l == 0 else H
        key, k1, k2, k3, k4 = jax.random.split(key, 5)
        w_ih = jax.random.uniform(k1, (4 * H, D_l), jnp.float32, -bound, bound)
        w_hh = jax.random.uniform(k2, (4 * H, H), jnp.float32, -bound, bound)
        b_ih = jax.random.uniform(k3, (4 * H,), jnp.float32, -bound, bound)
        b_hh = jax.random.uniform(k4, (4 * H,), jnp.float32, -bound, bound)
        raw["layers"].append({"w_ih_t": w_ih.T, "w_hh_t": w_hh.T,
                              "bias": (b_ih + b_hh)[None, :]})
        r = layout["w_ih"][l]
        w_slab = w_slab.at[r:r + D_l, 0:4 * H].set(w_ih.T)
        r = layout["w_hh"][l]
        w_slab = w_slab.at[r:r + H, 0:4 * H].set(w_hh.T)
        b_slab = b_slab.at[l, 0:4 * H].set(b_ih + b_hh)

    key, k1, k2 = jax.random.split(key, 3)
    w_fc = jax.random.uniform(k1, (output_dim, H), jnp.float32, -bound, bound)
    b_fc = jax.random.uniform(k2, (output_dim,), jnp.float32, -bound, bound)
    raw["fc_w_t"] = w_fc.T
    raw["fc_b"] = b_fc[None, :]
    r = layout["fc"]
    w_slab = w_slab.at[r:r + H, 0:output_dim].set(w_fc.T)
    b_slab = b_slab.at[n_layers, 0:output_dim].set(b_fc)

    kparams = {"w_slab": w_slab.astype(jnp.bfloat16), "b_slab": b_slab}
    return kparams, raw


# ------------------------------ references ------------------------------------

def lstm_forward_ref_bf16(raw, x):
    """Pure-JAX mirror of the kernel math (bf16 weights/operands, f32 accum)."""
    B, T, D = x.shape
    layer_in = jnp.transpose(x, (1, 0, 2)).astype(jnp.float32)   # (T, B, D)
    h = None
    for lyr in raw["layers"]:
        H = lyr["w_hh_t"].shape[0]
        w_ih = lyr["w_ih_t"].astype(jnp.bfloat16)
        w_hh = lyr["w_hh_t"].astype(jnp.bfloat16)
        bias = lyr["bias"]
        h = jnp.zeros((B, H), jnp.float32)
        c = jnp.zeros((B, H), jnp.float32)
        hs = []
        for t in range(T):
            pre = (jnp.dot(layer_in[t].astype(jnp.bfloat16), w_ih,
                           preferred_element_type=jnp.float32) + bias
                   + jnp.dot(h.astype(jnp.bfloat16), w_hh,
                             preferred_element_type=jnp.float32))
            i = jax.nn.sigmoid(pre[:, 0 * H:1 * H])
            f = jax.nn.sigmoid(pre[:, 1 * H:2 * H])
            g = jnp.tanh(pre[:, 2 * H:3 * H])
            o = jax.nn.sigmoid(pre[:, 3 * H:4 * H])
            c = f * c + i * g
            h = o * jnp.tanh(c)
            hs.append(h)
        layer_in = jnp.stack(hs, axis=0)
    return (jnp.dot(h.astype(jnp.bfloat16), raw["fc_w_t"].astype(jnp.bfloat16),
                    preferred_element_type=jnp.float32) + raw["fc_b"])


def lstm_forward_ref_f32(raw, x):
    """torch.nn.LSTM-semantics reference with the original unpadded f32 weights."""
    h_seq = jnp.transpose(x, (1, 0, 2)).astype(jnp.float32)
    for layer in raw["layers"]:
        H = layer["w_hh_t"].shape[0]
        B = h_seq.shape[1]

        def step(carry, x_t, layer=layer, H=H):
            h, c = carry
            gates = x_t @ layer["w_ih_t"] + h @ layer["w_hh_t"] + layer["bias"]
            i = jax.nn.sigmoid(gates[:, 0 * H:1 * H])
            f = jax.nn.sigmoid(gates[:, 1 * H:2 * H])
            g = jnp.tanh(gates[:, 2 * H:3 * H])
            o = jax.nn.sigmoid(gates[:, 3 * H:4 * H])
            c = f * c + i * g
            h = o * jnp.tanh(c)
            return (h, c), h

        init = (jnp.zeros((B, H), jnp.float32), jnp.zeros((B, H), jnp.float32))
        (_, _), h_seq = jax.lax.scan(step, init, h_seq)
    return h_seq[-1] @ raw["fc_w_t"] + raw["fc_b"]


# --------------------------------- main ----------------------------------------

if __name__ == "__main__":
    B, T = 2, 8
    input_dim, hidden_dim, n_layers, output_dim = 4, 32, 2, 3

    key = jax.random.PRNGKey(0)
    kx, kp = jax.random.split(key)
    x = jax.random.normal(kx, (B, T, input_dim), jnp.float32)
    kparams, raw = init_lstm_params(kp, input_dim, hidden_dim, n_layers,
                                    output_dim)

    out = lstm_forward(kparams, x, hidden_dim=hidden_dim, n_layers=n_layers,
                       output_dim=output_dim)
    out = jax.block_until_ready(out)
    assert out.shape == (B, output_dim), out.shape

    # Exact-math mirror of the kernel (same bf16 weights, f32 accumulate).
    ref_exact = lstm_forward_ref_bf16(raw, x)
    assert jnp.allclose(out, ref_exact, atol=2e-3, rtol=2e-3), (out, ref_exact)

    # torch-semantics f32 reference (loose tolerance: bf16 weights vs f32).
    ref_f32 = lstm_forward_ref_f32(raw, x)
    assert jnp.allclose(out, ref_f32, atol=5e-2), (out, ref_f32)

    print("KERNEL_OK")
</pallas_src>

<mosaic_0001>
module attributes {stable_mosaic.version = 11 : i64} {
  func.func @kernel(%arg0: memref<64x16xf32, #tpu.memory_space<vmem>>, %arg1: memref<144x128xbf16, #tpu.memory_space<vmem>>, %arg2: memref<3x128xf32, #tpu.memory_space<vmem>>, %arg3: memref<8x128xf32, #tpu.memory_space<vmem>>) attributes {dimension_semantics = [], scalar_prefetch = 0 : i64, scratch_operands = 0 : i64, tpu.core_type = #tpu.core_type<tc>} {
    %c0 = arith.constant 0 : index
    %c0_0 = arith.constant 0 : index
    %0 = vector.load %arg1[%c0, %c0_0] : memref<144x128xbf16, #tpu.memory_space<vmem>>, vector<144x128xbf16>
    %c0_1 = arith.constant 0 : index
    %c0_2 = arith.constant 0 : index
    %1 = vector.load %arg0[%c0_1, %c0_2] : memref<64x16xf32, #tpu.memory_space<vmem>>, vector<64x16xf32>
    %2 = arith.truncf %1 : vector<64x16xf32> to vector<64x16xbf16>
    %3 = vector.extract_strided_slice %0 {offsets = [0, 0], sizes = [16, 128], strides = [1, 1]} : vector<144x128xbf16> to vector<16x128xbf16>
    %cst = arith.constant dense<0.000000e+00> : vector<64x128xf32>
    %4 = tpu.matmul %2, %3, %cst {dimension_numbers = #tpu.dot_dimension_numbers<[1], [0], [0], [1], [0, 0, 1, 1], [], []>} : vector<64x16xbf16>, vector<16x128xbf16>, vector<64x128xf32> -> vector<64x128xf32>
    %c0_3 = arith.constant 0 : index
    %c0_4 = arith.constant 0 : index
    %5 = vector.load %arg2[%c0_3, %c0_4] : memref<3x128xf32, #tpu.memory_space<vmem>>, vector<1x128xf32>
    %6 = vector.broadcast %5 : vector<1x128xf32> to vector<64x128xf32>
    %7 = arith.addf %4, %6 : vector<64x128xf32>
    %8 = vector.extract_strided_slice %0 {offsets = [16, 0], sizes = [32, 128], strides = [1, 1]} : vector<144x128xbf16> to vector<32x128xbf16>
    %9 = vector.extract_strided_slice %0 {offsets = [80, 0], sizes = [32, 128], strides = [1, 1]} : vector<144x128xbf16> to vector<32x128xbf16>
    %10 = vector.extract_strided_slice %0 {offsets = [48, 0], sizes = [32, 128], strides = [1, 1]} : vector<144x128xbf16> to vector<32x128xbf16>
    %11 = vector.extract_strided_slice %0 {offsets = [112, 0], sizes = [32, 128], strides = [1, 1]} : vector<144x128xbf16> to vector<32x128xbf16>
    %c1 = arith.constant 1 : index
    %c0_5 = arith.constant 0 : index
    %12 = vector.load %arg2[%c1, %c0_5] : memref<3x128xf32, #tpu.memory_space<vmem>>, vector<1x128xf32>
    %13 = vector.shape_cast %12 : vector<1x128xf32> to vector<1x128xf32>
    %14 = vector.broadcast %13 : vector<1x128xf32> to vector<8x128xf32>
    %cst_6 = arith.constant 0.000000e+00 : f32
    %15 = vector.broadcast %cst_6 : f32 to vector<8x32xf32>
    %cst_7 = arith.constant 0.000000e+00 : f32
    %16 = vector.broadcast %cst_7 : f32 to vector<8x32xf32>
    %cst_8 = arith.constant 0.000000e+00 : f32
    %17 = vector.broadcast %cst_8 : f32 to vector<8x32xf32>
    %cst_9 = arith.constant 0.000000e+00 : f32
    %18 = vector.broadcast %cst_9 : f32 to vector<8x32xf32>
    %19 = arith.truncf %15 : vector<8x32xf32> to vector<8x32xbf16>
    %cst_10 = arith.constant dense<0.000000e+00> : vector<8x128xf32>
    %20 = tpu.matmul %19, %8, %cst_10 {dimension_numbers = #tpu.dot_dimension_numbers<[1], [0], [0], [1], [0, 0, 1, 1], [], []>} : vector<8x32xbf16>, vector<32x128xbf16>, vector<8x128xf32> -> vector<8x128xf32>
    %21 = vector.extract_strided_slice %7 {offsets = [0, 0], sizes = [8, 128], strides = [1, 1]} : vector<64x128xf32> to vector<8x128xf32>
    %22 = arith.addf %21, %20 : vector<8x128xf32>
    %23 = vector.extract_strided_slice %22 {offsets = [0, 0], sizes = [8, 32], strides = [1, 1]} : vector<8x128xf32> to vector<8x32xf32>
    %24 = arith.negf %23 : vector<8x32xf32>
    %25 = math.exp %24 : vector<8x32xf32>
    %cst_11 = arith.constant 1.000000e+00 : f32
    %26 = vector.broadcast %cst_11 : f32 to vector<8x32xf32>
    %27 = arith.addf %26, %25 : vector<8x32xf32>
    %28 = arith.divf %26, %27 : vector<8x32xf32>
    %29 = vector.extract_strided_slice %22 {offsets = [0, 32], sizes = [8, 32], strides = [1, 1]} : vector<8x128xf32> to vector<8x32xf32>
    %30 = arith.negf %29 : vector<8x32xf32>
    %31 = math.exp %30 : vector<8x32xf32>
    %cst_12 = arith.constant 1.000000e+00 : f32
    %32 = vector.broadcast %cst_12 : f32 to vector<8x32xf32>
    %33 = arith.addf %32, %31 : vector<8x32xf32>
    %34 = arith.divf %32, %33 : vector<8x32xf32>
    %35 = vector.extract_strided_slice %22 {offsets = [0, 64], sizes = [8, 32], strides = [1, 1]} : vector<8x128xf32> to vector<8x32xf32>
    %36 = math.tanh %35 : vector<8x32xf32>
    %37 = vector.extract_strided_slice %22 {offsets = [0, 96], sizes = [8, 32], strides = [1, 1]} : vector<8x128xf32> to vector<8x32xf32>
    %38 = arith.negf %37 : vector<8x32xf32>
    %39 = math.exp %38 : vector<8x32xf32>
    %cst_13 = arith.constant 1.000000e+00 : f32
    %40 = vector.broadcast %cst_13 : f32 to vector<8x32xf32>
    %41 = arith.addf %40, %39 : vector<8x32xf32>
    %42 = arith.divf %40, %41 : vector<8x32xf32>
    %43 = arith.mulf %34, %17 : vector<8x32xf32>
    %44 = arith.mulf %28, %36 : vector<8x32xf32>
    %45 = arith.addf %43, %44 : vector<8x32xf32>
    %46 = math.tanh %45 : vector<8x32xf32>
    %47 = arith.mulf %42, %46 : vector<8x32xf32>
    %48 = arith.truncf %47 : vector<8x32xf32> to vector<8x32xbf16>
    %cst_14 = arith.constant dense<0.000000e+00> : vector<8x128xf32>
    %49 = tpu.matmul %48, %8, %cst_14 {dimension_numbers = #tpu.dot_dimension_numbers<[1], [0], [0], [1], [0, 0, 1, 1], [], []>} : vector<8x32xbf16>, vector<32x128xbf16>, vector<8x128xf32> -> vector<8x128xf32>
    %50 = vector.extract_strided_slice %7 {offsets = [8, 0], sizes = [8, 128], strides = [1, 1]} : vector<64x128xf32> to vector<8x128xf32>
    %51 = arith.addf %50, %49 : vector<8x128xf32>
    %52 = vector.extract_strided_slice %51 {offsets = [0, 0], sizes = [8, 32], strides = [1, 1]} : vector<8x128xf32> to vector<8x32xf32>
    %53 = arith.negf %52 : vector<8x32xf32>
    %54 = math.exp %53 : vector<8x32xf32>
    %cst_15 = arith.constant 1.000000e+00 : f32
    %55 = vector.broadcast %cst_15 : f32 to vector<8x32xf32>
    %56 = arith.addf %55, %54 : vector<8x32xf32>
    %57 = arith.divf %55, %56 : vector<8x32xf32>
    %58 = vector.extract_strided_slice %51 {offsets = [0, 32], sizes = [8, 32], strides = [1, 1]} : vector<8x128xf32> to vector<8x32xf32>
    %59 = arith.negf %58 : vector<8x32xf32>
    %60 = math.exp %59 : vector<8x32xf32>
    %cst_16 = arith.constant 1.000000e+00 : f32
    %61 = vector.broadcast %cst_16 : f32 to vector<8x32xf32>
    %62 = arith.addf %61, %60 : vector<8x32xf32>
    %63 = arith.divf %61, %62 : vector<8x32xf32>
    %64 = vector.extract_strided_slice %51 {offsets = [0, 64], sizes = [8, 32], strides = [1, 1]} : vector<8x128xf32> to vector<8x32xf32>
    %65 = math.tanh %64 : vector<8x32xf32>
    %66 = vector.extract_strided_slice %51 {offsets = [0, 96], sizes = [8, 32], strides = [1, 1]} : vector<8x128xf32> to vector<8x32xf32>
    %67 = arith.negf %66 : vector<8x32xf32>
    %68 = math.exp %67 : vector<8x32xf32>
    %cst_17 = arith.constant 1.000000e+00 : f32
    %69 = vector.broadcast %cst_17 : f32 to vector<8x32xf32>
    %70 = arith.addf %69, %68 : vector<8x32xf32>
    %71 = arith.divf %69, %70 : vector<8x32xf32>
    %72 = arith.mulf %63, %45 : vector<8x32xf32>
    %73 = arith.mulf %57, %65 : vector<8x32xf32>
    %74 = arith.addf %72, %73 : vector<8x32xf32>
    %75 = math.tanh %74 : vector<8x32xf32>
    %76 = arith.mulf %71, %75 : vector<8x32xf32>
    %77 = arith.truncf %16 : vector<8x32xf32> to vector<8x32xbf16>
    %cst_18 = arith.constant dense<0.000000e+00> : vector<8x128xf32>
    %78 = tpu.matmul %77, %9, %cst_18 {dimension_numbers = #tpu.dot_dimension_numbers<[1], [0], [0], [1], [0, 0, 1, 1], [], []>} : vector<8x32xbf16>, vector<32x128xbf16>, vector<8x128xf32> -> vector<8x128xf32>
    %79 = arith.truncf %47 : vector<8x32xf32> to vector<8x32xbf16>
    %cst_19 = arith.constant dense<0.000000e+00> : vector<8x128xf32>
    %80 = tpu.matmul %79, %10, %cst_19 {dimension_numbers = #tpu.dot_dimension_numbers<[1], [0], [0], [1], [0, 0, 1, 1], [], []>} : vector<8x32xbf16>, vector<32x128xbf16>, vector<8x128xf32> -> vector<8x128xf32>
    %81 = arith.addf %14, %80 : vector<8x128xf32>
    %82 = arith.addf %81, %78 : vector<8x128xf32>
    %83 = vector.extract_strided_slice %82 {offsets = [0, 0], sizes = [8, 32], strides = [1, 1]} : vector<8x128xf32> to vector<8x32xf32>
    %84 = arith.negf %83 : vector<8x32xf32>
    %85 = math.exp %84 : vector<8x32xf32>
    %cst_20 = arith.constant 1.000000e+00 : f32
    %86 = vector.broadcast %cst_20 : f32 to vector<8x32xf32>
    %87 = arith.addf %86, %85 : vector<8x32xf32>
    %88 = arith.divf %86, %87 : vector<8x32xf32>
    %89 = vector.extract_strided_slice %82 {offsets = [0, 32], sizes = [8, 32], strides = [1, 1]} : vector<8x128xf32> to vector<8x32xf32>
    %90 = arith.negf %89 : vector<8x32xf32>
    %91 = math.exp %90 : vector<8x32xf32>
    %cst_21 = arith.constant 1.000000e+00 : f32
    %92 = vector.broadcast %cst_21 : f32 to vector<8x32xf32>
    %93 = arith.addf %92, %91 : vector<8x32xf32>
    %94 = arith.divf %92, %93 : vector<8x32xf32>
    %95 = vector.extract_strided_slice %82 {offsets = [0, 64], sizes = [8, 32], strides = [1, 1]} : vector<8x128xf32> to vector<8x32xf32>
    %96 = math.tanh %95 : vector<8x32xf32>
    %97 = vector.extract_strided_slice %82 {offsets = [0, 96], sizes = [8, 32], strides = [1, 1]} : vector<8x128xf32> to vector<8x32xf32>
    %98 = arith.negf %97 : vector<8x32xf32>
    %99 = math.exp %98 : vector<8x32xf32>
    %cst_22 = arith.constant 1.000000e+00 : f32
    %100 = vector.broadcast %cst_22 : f32 to vector<8x32xf32>
    %101 = arith.addf %100, %99 : vector<8x32xf32>
    %102 = arith.divf %100, %101 : vector<8x32xf32>
    %103 = arith.mulf %94, %18 : vector<8x32xf32>
    %104 = arith.mulf %88, %96 : vector<8x32xf32>
    %105 = arith.addf %103, %104 : vector<8x32xf32>
    %106 = math.tanh %105 : vector<8x32xf32>
    %107 = arith.mulf %102, %106 : vector<8x32xf32>
    %108 = arith.truncf %76 : vector<8x32xf32> to vector<8x32xbf16>
    %cst_23 = arith.constant dense<0.000000e+00> : vector<8x128xf32>
    %109 = tpu.matmul %108, %8, %cst_23 {dimension_numbers = #tpu.dot_dimension_numbers<[1], [0], [0], [1], [0, 0, 1, 1], [], []>} : vector<8x32xbf16>, vector<32x128xbf16>, vector<8x128xf32> -> vector<8x128xf32>
    %110 = vector.extract_strided_slice %7 {offsets = [16, 0], sizes = [8, 128], strides = [1, 1]} : vector<64x128xf32> to vector<8x128xf32>
    %111 = arith.addf %110, %109 : vector<8x128xf32>
    %112 = vector.extract_strided_slice %111 {offsets = [0, 0], sizes = [8, 32], strides = [1, 1]} : vector<8x128xf32> to vector<8x32xf32>
    %113 = arith.negf %112 : vector<8x32xf32>
    %114 = math.exp %113 : vector<8x32xf32>
    %cst_24 = arith.constant 1.000000e+00 : f32
    %115 = vector.broadcast %cst_24 : f32 to vector<8x32xf32>
    %116 = arith.addf %115, %114 : vector<8x32xf32>
    %117 = arith.divf %115, %116 : vector<8x32xf32>
    %118 = vector.extract_strided_slice %111 {offsets = [0, 32], sizes = [8, 32], strides = [1, 1]} : vector<8x128xf32> to vector<8x32xf32>
    %119 = arith.negf %118 : vector<8x32xf32>
    %120 = math.exp %119 : vector<8x32xf32>
    %cst_25 = arith.constant 1.000000e+00 : f32
    %121 = vector.broadcast %cst_25 : f32 to vector<8x32xf32>
    %122 = arith.addf %121, %120 : vector<8x32xf32>
    %123 = arith.divf %121, %122 : vector<8x32xf32>
    %124 = vector.extract_strided_slice %111 {offsets = [0, 64], sizes = [8, 32], strides = [1, 1]} : vector<8x128xf32> to vector<8x32xf32>
    %125 = math.tanh %124 : vector<8x32xf32>
    %126 = vector.extract_strided_slice %111 {offsets = [0, 96], sizes = [8, 32], strides = [1, 1]} : vector<8x128xf32> to vector<8x32xf32>
    %127 = arith.negf %126 : vector<8x32xf32>
    %128 = math.exp %127 : vector<8x32xf32>
    %cst_26 = arith.constant 1.000000e+00 : f32
    %129 = vector.broadcast %cst_26 : f32 to vector<8x32xf32>
    %130 = arith.addf %129, %128 : vector<8x32xf32>
    %131 = arith.divf %129, %130 : vector<8x32xf32>
    %132 = arith.mulf %123, %74 : vector<8x32xf32>
    %133 = arith.mulf %117, %125 : vector<8x32xf32>
    %134 = arith.addf %132, %133 : vector<8x32xf32>
    %135 = math.tanh %134 : vector<8x32xf32>
    %136 = arith.mulf %131, %135 : vector<8x32xf32>
    %137 = arith.truncf %107 : vector<8x32xf32> to vector<8x32xbf16>
    %cst_27 = arith.constant dense<0.000000e+00> : vector<8x128xf32>
    %138 = tpu.matmul %137, %9, %cst_27 {dimension_numbers = #tpu.dot_dimension_numbers<[1], [0], [0], [1], [0, 0, 1, 1], [], []>} : vector<8x32xbf16>, vector<32x128xbf16>, vector<8x128xf32> -> vector<8x128xf32>
    %139 = arith.truncf %76 : vector<8x32xf32> to vector<8x32xbf16>
    %cst_28 = arith.constant dense<0.000000e+00> : vector<8x128xf32>
    %140 = tpu.matmul %139, %10, %cst_28 {dimension_numbers = #tpu.dot_dimension_numbers<[1], [0], [0], [1], [0, 0, 1, 1], [], []>} : vector<8x32xbf16>, vector<32x128xbf16>, vector<8x128xf32> -> vector<8x128xf32>
    %141 = arith.addf %14, %140 : vector<8x128xf32>
    %142 = arith.addf %141, %138 : vector<8x128xf32>
    %143 = vector.extract_strided_slice %142 {offsets = [0, 0], sizes = [8, 32], strides = [1, 1]} : vector<8x128xf32> to vector<8x32xf32>
    %144 = arith.negf %143 : vector<8x32xf32>
    %145 = math.exp %144 : vector<8x32xf32>
    %cst_29 = arith.constant 1.000000e+00 : f32
    %146 = vector.broadcast %cst_29 : f32 to vector<8x32xf32>
    %147 = arith.addf %146, %145 : vector<8x32xf32>
    %148 = arith.divf %146, %147 : vector<8x32xf32>
    %149 = vector.extract_strided_slice %142 {offsets = [0, 32], sizes = [8, 32], strides = [1, 1]} : vector<8x128xf32> to vector<8x32xf32>
    %150 = arith.negf %149 : vector<8x32xf32>
    %151 = math.exp %150 : vector<8x32xf32>
    %cst_30 = arith.constant 1.000000e+00 : f32
    %152 = vector.broadcast %cst_30 : f32 to vector<8x32xf32>
    %153 = arith.addf %152, %151 : vector<8x32xf32>
    %154 = arith.divf %152, %153 : vector<8x32xf32>
    %155 = vector.extract_strided_slice %142 {offsets = [0, 64], sizes = [8, 32], strides = [1, 1]} : vector<8x128xf32> to vector<8x32xf32>
    %156 = math.tanh %155 : vector<8x32xf32>
    %157 = vector.extract_strided_slice %142 {offsets = [0, 96], sizes = [8, 32], strides = [1, 1]} : vector<8x128xf32> to vector<8x32xf32>
    %158 = arith.negf %157 : vector<8x32xf32>
    %159 = math.exp %158 : vector<8x32xf32>
    %cst_31 = arith.constant 1.000000e+00 : f32
    %160 = vector.broadcast %cst_31 : f32 to vector<8x32xf32>
    %161 = arith.addf %160, %159 : vector<8x32xf32>
    %162 = arith.divf %160, %161 : vector<8x32xf32>
    %163 = arith.mulf %154, %105 : vector<8x32xf32>
    %164 = arith.mulf %148, %156 : vector<8x32xf32>
    %165 = arith.addf %163, %164 : vector<8x32xf32>
    %166 = math.tanh %165 : vector<8x32xf32>
    %167 = arith.mulf %162, %166 : vector<8x32xf32>
    %168 = arith.truncf %136 : vector<8x32xf32> to vector<8x32xbf16>
    %cst_32 = arith.constant dense<0.000000e+00> : vector<8x128xf32>
    %169 = tpu.matmul %168, %8, %cst_32 {dimension_numbers = #tpu.dot_dimension_numbers<[1], [0], [0], [1], [0, 0, 1, 1], [], []>} : vector<8x32xbf16>, vector<32x128xbf16>, vector<8x128xf32> -> vector<8x128xf32>
    %170 = vector.extract_strided_slice %7 {offsets = [24, 0], sizes = [8, 128], strides = [1, 1]} : vector<64x128xf32> to vector<8x128xf32>
    %171 = arith.addf %170, %169 : vector<8x128xf32>
    %172 = vector.extract_strided_slice %171 {offsets = [0, 0], sizes = [8, 32], strides = [1, 1]} : vector<8x128xf32> to vector<8x32xf32>
    %173 = arith.negf %172 : vector<8x32xf32>
    %174 = math.exp %173 : vector<8x32xf32>
    %cst_33 = arith.constant 1.000000e+00 : f32
    %175 = vector.broadcast %cst_33 : f32 to vector<8x32xf32>
    %176 = arith.addf %175, %174 : vector<8x32xf32>
    %177 = arith.divf %175, %176 : vector<8x32xf32>
    %178 = vector.extract_strided_slice %171 {offsets = [0, 32], sizes = [8, 32], strides = [1, 1]} : vector<8x128xf32> to vector<8x32xf32>
    %179 = arith.negf %178 : vector<8x32xf32>
    %180 = math.exp %179 : vector<8x32xf32>
    %cst_34 = arith.constant 1.000000e+00 : f32
    %181 = vector.broadcast %cst_34 : f32 to vector<8x32xf32>
    %182 = arith.addf %181, %180 : vector<8x32xf32>
    %183 = arith.divf %181, %182 : vector<8x32xf32>
    %184 = vector.extract_strided_slice %171 {offsets = [0, 64], sizes = [8, 32], strides = [1, 1]} : vector<8x128xf32> to vector<8x32xf32>
    %185 = math.tanh %184 : vector<8x32xf32>
    %186 = vector.extract_strided_slice %171 {offsets = [0, 96], sizes = [8, 32], strides = [1, 1]} : vector<8x128xf32> to vector<8x32xf32>
    %187 = arith.negf %186 : vector<8x32xf32>
    %188 = math.exp %187 : vector<8x32xf32>
    %cst_35 = arith.constant 1.000000e+00 : f32
    %189 = vector.broadcast %cst_35 : f32 to vector<8x32xf32>
    %190 = arith.addf %189, %188 : vector<8x32xf32>
    %191 = arith.divf %189, %190 : vector<8x32xf32>
    %192 = arith.mulf %183, %134 : vector<8x32xf32>
    %193 = arith.mulf %177, %185 : vector<8x32xf32>
    %194 = arith.addf %192, %193 : vector<8x32xf32>
    %195 = math.tanh %194 : vector<8x32xf32>
    %196 = arith.mulf %191, %195 : vector<8x32xf32>
    %197 = arith.truncf %167 : vector<8x32xf32> to vector<8x32xbf16>
    %cst_36 = arith.constant dense<0.000000e+00> : vector<8x128xf32>
    %198 = tpu.matmul %197, %9, %cst_36 {dimension_numbers = #tpu.dot_dimension_numbers<[1], [0], [0], [1], [0, 0, 1, 1], [], []>} : vector<8x32xbf16>, vector<32x128xbf16>, vector<8x128xf32> -> vector<8x128xf32>
    %199 = arith.truncf %136 : vector<8x32xf32> to vector<8x32xbf16>
    %cst_37 = arith.constant dense<0.000000e+00> : vector<8x128xf32>
    %200 = tpu.matmul %199, %10, %cst_37 {dimension_numbers = #tpu.dot_dimension_numbers<[1], [0], [0], [1], [0, 0, 1, 1], [], []>} : vector<8x32xbf16>, vector<32x128xbf16>, vector<8x128xf32> -> vector<8x128xf32>
    %201 = arith.addf %14, %200 : vector<8x128xf32>
    %202 = arith.addf %201, %198 : vector<8x128xf32>
    %203 = vector.extract_strided_slice %202 {offsets = [0, 0], sizes = [8, 32], strides = [1, 1]} : vector<8x128xf32> to vector<8x32xf32>
    %204 = arith.negf %203 : vector<8x32xf32>
    %205 = math.exp %204 : vector<8x32xf32>
    %cst_38 = arith.constant 1.000000e+00 : f32
    %206 = vector.broadcast %cst_38 : f32 to vector<8x32xf32>
    %207 = arith.addf %206, %205 : vector<8x32xf32>
    %208 = arith.divf %206, %207 : vector<8x32xf32>
    %209 = vector.extract_strided_slice %202 {offsets = [0, 32], sizes = [8, 32], strides = [1, 1]} : vector<8x128xf32> to vector<8x32xf32>
    %210 = arith.negf %209 : vector<8x32xf32>
    %211 = math.exp %210 : vector<8x32xf32>
    %cst_39 = arith.constant 1.000000e+00 : f32
    %212 = vector.broadcast %cst_39 : f32 to vector<8x32xf32>
    %213 = arith.addf %212, %211 : vector<8x32xf32>
    %214 = arith.divf %212, %213 : vector<8x32xf32>
    %215 = vector.extract_strided_slice %202 {offsets = [0, 64], sizes = [8, 32], strides = [1, 1]} : vector<8x128xf32> to vector<8x32xf32>
    %216 = math.tanh %215 : vector<8x32xf32>
    %217 = vector.extract_strided_slice %202 {offsets = [0, 96], sizes = [8, 32], strides = [1, 1]} : vector<8x128xf32> to vector<8x32xf32>
    %218 = arith.negf %217 : vector<8x32xf32>
    %219 = math.exp %218 : vector<8x32xf32>
    %cst_40 = arith.constant 1.000000e+00 : f32
    %220 = vector.broadcast %cst_40 : f32 to vector<8x32xf32>
    %221 = arith.addf %220, %219 : vector<8x32xf32>
    %222 = arith.divf %220, %221 : vector<8x32xf32>
    %223 = arith.mulf %214, %165 : vector<8x32xf32>
    %224 = arith.mulf %208, %216 : vector<8x32xf32>
    %225 = arith.addf %223, %224 : vector<8x32xf32>
    %226 = math.tanh %225 : vector<8x32xf32>
    %227 = arith.mulf %222, %226 : vector<8x32xf32>
    %228 = arith.truncf %196 : vector<8x32xf32> to vector<8x32xbf16>
    %cst_41 = arith.constant dense<0.000000e+00> : vector<8x128xf32>
    %229 = tpu.matmul %228, %8, %cst_41 {dimension_numbers = #tpu.dot_dimension_numbers<[1], [0], [0], [1], [0, 0, 1, 1], [], []>} : vector<8x32xbf16>, vector<32x128xbf16>, vector<8x128xf32> -> vector<8x128xf32>
    %230 = vector.extract_strided_slice %7 {offsets = [32, 0], sizes = [8, 128], strides = [1, 1]} : vector<64x128xf32> to vector<8x128xf32>
    %231 = arith.addf %230, %229 : vector<8x128xf32>
    %232 = vector.extract_strided_slice %231 {offsets = [0, 0], sizes = [8, 32], strides = [1, 1]} : vector<8x128xf32> to vector<8x32xf32>
    %233 = arith.negf %232 : vector<8x32xf32>
    %234 = math.exp %233 : vector<8x32xf32>
    %cst_42 = arith.constant 1.000000e+00 : f32
    %235 = vector.broadcast %cst_42 : f32 to vector<8x32xf32>
    %236 = arith.addf %235, %234 : vector<8x32xf32>
    %237 = arith.divf %235, %236 : vector<8x32xf32>
    %238 = vector.extract_strided_slice %231 {offsets = [0, 32], sizes = [8, 32], strides = [1, 1]} : vector<8x128xf32> to vector<8x32xf32>
    %239 = arith.negf %238 : vector<8x32xf32>
    %240 = math.exp %239 : vector<8x32xf32>
    %cst_43 = arith.constant 1.000000e+00 : f32
    %241 = vector.broadcast %cst_43 : f32 to vector<8x32xf32>
    %242 = arith.addf %241, %240 : vector<8x32xf32>
    %243 = arith.divf %241, %242 : vector<8x32xf32>
    %244 = vector.extract_strided_slice %231 {offsets = [0, 64], sizes = [8, 32], strides = [1, 1]} : vector<8x128xf32> to vector<8x32xf32>
    %245 = math.tanh %244 : vector<8x32xf32>
    %246 = vector.extract_strided_slice %231 {offsets = [0, 96], sizes = [8, 32], strides = [1, 1]} : vector<8x128xf32> to vector<8x32xf32>
    %247 = arith.negf %246 : vector<8x32xf32>
    %248 = math.exp %247 : vector<8x32xf32>
    %cst_44 = arith.constant 1.000000e+00 : f32
    %249 = vector.broadcast %cst_44 : f32 to vector<8x32xf32>
    %250 = arith.addf %249, %248 : vector<8x32xf32>
    %251 = arith.divf %249, %250 : vector<8x32xf32>
    %252 = arith.mulf %243, %194 : vector<8x32xf32>
    %253 = arith.mulf %237, %245 : vector<8x32xf32>
    %254 = arith.addf %252, %253 : vector<8x32xf32>
    %255 = math.tanh %254 : vector<8x32xf32>
    %256 = arith.mulf %251, %255 : vector<8x32xf32>
    %257 = arith.truncf %227 : vector<8x32xf32> to vector<8x32xbf16>
    %cst_45 = arith.constant dense<0.000000e+00> : vector<8x128xf32>
    %258 = tpu.matmul %257, %9, %cst_45 {dimension_numbers = #tpu.dot_dimension_numbers<[1], [0], [0], [1], [0, 0, 1, 1], [], []>} : vector<8x32xbf16>, vector<32x128xbf16>, vector<8x128xf32> -> vector<8x128xf32>
    %259 = arith.truncf %196 : vector<8x32xf32> to vector<8x32xbf16>
    %cst_46 = arith.constant dense<0.000000e+00> : vector<8x128xf32>
    %260 = tpu.matmul %259, %10, %cst_46 {dimension_numbers = #tpu.dot_dimension_numbers<[1], [0], [0], [1], [0, 0, 1, 1], [], []>} : vector<8x32xbf16>, vector<32x128xbf16>, vector<8x128xf32> -> vector<8x128xf32>
    %261 = arith.addf %14, %260 : vector<8x128xf32>
    %262 = arith.addf %261, %258 : vector<8x128xf32>
    %263 = vector.extract_strided_slice %262 {offsets = [0, 0], sizes = [8, 32], strides = [1, 1]} : vector<8x128xf32> to vector<8x32xf32>
    %264 = arith.negf %263 : vector<8x32xf32>
    %265 = math.exp %264 : vector<8x32xf32>
    %cst_47 = arith.constant 1.000000e+00 : f32
    %266 = vector.broadcast %cst_47 : f32 to vector<8x32xf32>
    %267 = arith.addf %266, %265 : vector<8x32xf32>
    %268 = arith.divf %266, %267 : vector<8x32xf32>
    %269 = vector.extract_strided_slice %262 {offsets = [0, 32], sizes = [8, 32], strides = [1, 1]} : vector<8x128xf32> to vector<8x32xf32>
    %270 = arith.negf %269 : vector<8x32xf32>
    %271 = math.exp %270 : vector<8x32xf32>
    %cst_48 = arith.constant 1.000000e+00 : f32
    %272 = vector.broadcast %cst_48 : f32 to vector<8x32xf32>
    %273 = arith.addf %272, %271 : vector<8x32xf32>
    %274 = arith.divf %272, %273 : vector<8x32xf32>
    %275 = vector.extract_strided_slice %262 {offsets = [0, 64], sizes = [8, 32], strides = [1, 1]} : vector<8x128xf32> to vector<8x32xf32>
    %276 = math.tanh %275 : vector<8x32xf32>
    %277 = vector.extract_strided_slice %262 {offsets = [0, 96], sizes = [8, 32], strides = [1, 1]} : vector<8x128xf32> to vector<8x32xf32>
    %278 = arith.negf %277 : vector<8x32xf32>
    %279 = math.exp %278 : vector<8x32xf32>
    %cst_49 = arith.constant 1.000000e+00 : f32
    %280 = vector.broadcast %cst_49 : f32 to vector<8x32xf32>
    %281 = arith.addf %280, %279 : vector<8x32xf32>
    %282 = arith.divf %280, %281 : vector<8x32xf32>
    %283 = arith.mulf %274, %225 : vector<8x32xf32>
    %284 = arith.mulf %268, %276 : vector<8x32xf32>
    %285 = arith.addf %283, %284 : vector<8x32xf32>
    %286 = math.tanh %285 : vector<8x32xf32>
    %287 = arith.mulf %282, %286 : vector<8x32xf32>
    %288 = arith.truncf %256 : vector<8x32xf32> to vector<8x32xbf16>
    %cst_50 = arith.constant dense<0.000000e+00> : vector<8x128xf32>
    %289 = tpu.matmul %288, %8, %cst_50 {dimension_numbers = #tpu.dot_dimension_numbers<[1], [0], [0], [1], [0, 0, 1, 1], [], []>} : vector<8x32xbf16>, vector<32x128xbf16>, vector<8x128xf32> -> vector<8x128xf32>
    %290 = vector.extract_strided_slice %7 {offsets = [40, 0], sizes = [8, 128], strides = [1, 1]} : vector<64x128xf32> to vector<8x128xf32>
    %291 = arith.addf %290, %289 : vector<8x128xf32>
    %292 = vector.extract_strided_slice %291 {offsets = [0, 0], sizes = [8, 32], strides = [1, 1]} : vector<8x128xf32> to vector<8x32xf32>
    %293 = arith.negf %292 : vector<8x32xf32>
    %294 = math.exp %293 : vector<8x32xf32>
    %cst_51 = arith.constant 1.000000e+00 : f32
    %295 = vector.broadcast %cst_51 : f32 to vector<8x32xf32>
    %296 = arith.addf %295, %294 : vector<8x32xf32>
    %297 = arith.divf %295, %296 : vector<8x32xf32>
    %298 = vector.extract_strided_slice %291 {offsets = [0, 32], sizes = [8, 32], strides = [1, 1]} : vector<8x128xf32> to vector<8x32xf32>
    %299 = arith.negf %298 : vector<8x32xf32>
    %300 = math.exp %299 : vector<8x32xf32>
    %cst_52 = arith.constant 1.000000e+00 : f32
    %301 = vector.broadcast %cst_52 : f32 to vector<8x32xf32>
    %302 = arith.addf %301, %300 : vector<8x32xf32>
    %303 = arith.divf %301, %302 : vector<8x32xf32>
    %304 = vector.extract_strided_slice %291 {offsets = [0, 64], sizes = [8, 32], strides = [1, 1]} : vector<8x128xf32> to vector<8x32xf32>
    %305 = math.tanh %304 : vector<8x32xf32>
    %306 = vector.extract_strided_slice %291 {offsets = [0, 96], sizes = [8, 32], strides = [1, 1]} : vector<8x128xf32> to vector<8x32xf32>
    %307 = arith.negf %306 : vector<8x32xf32>
    %308 = math.exp %307 : vector<8x32xf32>
    %cst_53 = arith.constant 1.000000e+00 : f32
    %309 = vector.broadcast %cst_53 : f32 to vector<8x32xf32>
    %310 = arith.addf %309, %308 : vector<8x32xf32>
    %311 = arith.divf %309, %310 : vector<8x32xf32>
    %312 = arith.mulf %303, %254 : vector<8x32xf32>
    %313 = arith.mulf %297, %305 : vector<8x32xf32>
    %314 = arith.addf %312, %313 : vector<8x32xf32>
    %315 = math.tanh %314 : vector<8x32xf32>
    %316 = arith.mulf %311, %315 : vector<8x32xf32>
    %317 = arith.truncf %287 : vector<8x32xf32> to vector<8x32xbf16>
    %cst_54 = arith.constant dense<0.000000e+00> : vector<8x128xf32>
    %318 = tpu.matmul %317, %9, %cst_54 {dimension_numbers = #tpu.dot_dimension_numbers<[1], [0], [0], [1], [0, 0, 1, 1], [], []>} : vector<8x32xbf16>, vector<32x128xbf16>, vector<8x128xf32> -> vector<8x128xf32>
    %319 = arith.truncf %256 : vector<8x32xf32> to vector<8x32xbf16>
    %cst_55 = arith.constant dense<0.000000e+00> : vector<8x128xf32>
    %320 = tpu.matmul %319, %10, %cst_55 {dimension_numbers = #tpu.dot_dimension_numbers<[1], [0], [0], [1], [0, 0, 1, 1], [], []>} : vector<8x32xbf16>, vector<32x128xbf16>, vector<8x128xf32> -> vector<8x128xf32>
    %321 = arith.addf %14, %320 : vector<8x128xf32>
    %322 = arith.addf %321, %318 : vector<8x128xf32>
    %323 = vector.extract_strided_slice %322 {offsets = [0, 0], sizes = [8, 32], strides = [1, 1]} : vector<8x128xf32> to vector<8x32xf32>
    %324 = arith.negf %323 : vector<8x32xf32>
    %325 = math.exp %324 : vector<8x32xf32>
    %cst_56 = arith.constant 1.000000e+00 : f32
    %326 = vector.broadcast %cst_56 : f32 to vector<8x32xf32>
    %327 = arith.addf %326, %325 : vector<8x32xf32>
    %328 = arith.divf %326, %327 : vector<8x32xf32>
    %329 = vector.extract_strided_slice %322 {offsets = [0, 32], sizes = [8, 32], strides = [1, 1]} : vector<8x128xf32> to vector<8x32xf32>
    %330 = arith.negf %329 : vector<8x32xf32>
    %331 = math.exp %330 : vector<8x32xf32>
    %cst_57 = arith.constant 1.000000e+00 : f32
    %332 = vector.broadcast %cst_57 : f32 to vector<8x32xf32>
    %333 = arith.addf %332, %331 : vector<8x32xf32>
    %334 = arith.divf %332, %333 : vector<8x32xf32>
    %335 = vector.extract_strided_slice %322 {offsets = [0, 64], sizes = [8, 32], strides = [1, 1]} : vector<8x128xf32> to vector<8x32xf32>
    %336 = math.tanh %335 : vector<8x32xf32>
    %337 = vector.extract_strided_slice %322 {offsets = [0, 96], sizes = [8, 32], strides = [1, 1]} : vector<8x128xf32> to vector<8x32xf32>
    %338 = arith.negf %337 : vector<8x32xf32>
    %339 = math.exp %338 : vector<8x32xf32>
    %cst_58 = arith.constant 1.000000e+00 : f32
    %340 = vector.broadcast %cst_58 : f32 to vector<8x32xf32>
    %341 = arith.addf %340, %339 : vector<8x32xf32>
    %342 = arith.divf %340, %341 : vector<8x32xf32>
    %343 = arith.mulf %334, %285 : vector<8x32xf32>
    %344 = arith.mulf %328, %336 : vector<8x32xf32>
    %345 = arith.addf %343, %344 : vector<8x32xf32>
    %346 = math.tanh %345 : vector<8x32xf32>
    %347 = arith.mulf %342, %346 : vector<8x32xf32>
    %348 = arith.truncf %316 : vector<8x32xf32> to vector<8x32xbf16>
    %cst_59 = arith.constant dense<0.000000e+00> : vector<8x128xf32>
    %349 = tpu.matmul %348, %8, %cst_59 {dimension_numbers = #tpu.dot_dimension_numbers<[1], [0], [0], [1], [0, 0, 1, 1], [], []>} : vector<8x32xbf16>, vector<32x128xbf16>, vector<8x128xf32> -> vector<8x128xf32>
    %350 = vector.extract_strided_slice %7 {offsets = [48, 0], sizes = [8, 128], strides = [1, 1]} : vector<64x128xf32> to vector<8x128xf32>
    %351 = arith.addf %350, %349 : vector<8x128xf32>
    %352 = vector.extract_strided_slice %351 {offsets = [0, 0], sizes = [8, 32], strides = [1, 1]} : vector<8x128xf32> to vector<8x32xf32>
    %353 = arith.negf %352 : vector<8x32xf32>
    %354 = math.exp %353 : vector<8x32xf32>
    %cst_60 = arith.constant 1.000000e+00 : f32
    %355 = vector.broadcast %cst_60 : f32 to vector<8x32xf32>
    %356 = arith.addf %355, %354 : vector<8x32xf32>
    %357 = arith.divf %355, %356 : vector<8x32xf32>
    %358 = vector.extract_strided_slice %351 {offsets = [0, 32], sizes = [8, 32], strides = [1, 1]} : vector<8x128xf32> to vector<8x32xf32>
    %359 = arith.negf %358 : vector<8x32xf32>
    %360 = math.exp %359 : vector<8x32xf32>
    %cst_61 = arith.constant 1.000000e+00 : f32
    %361 = vector.broadcast %cst_61 : f32 to vector<8x32xf32>
    %362 = arith.addf %361, %360 : vector<8x32xf32>
    %363 = arith.divf %361, %362 : vector<8x32xf32>
    %364 = vector.extract_strided_slice %351 {offsets = [0, 64], sizes = [8, 32], strides = [1, 1]} : vector<8x128xf32> to vector<8x32xf32>
    %365 = math.tanh %364 : vector<8x32xf32>
    %366 = vector.extract_strided_slice %351 {offsets = [0, 96], sizes = [8, 32], strides = [1, 1]} : vector<8x128xf32> to vector<8x32xf32>
    %367 = arith.negf %366 : vector<8x32xf32>
    %368 = math.exp %367 : vector<8x32xf32>
    %cst_62 = arith.constant 1.000000e+00 : f32
    %369 = vector.broadcast %cst_62 : f32 to vector<8x32xf32>
    %370 = arith.addf %369, %368 : vector<8x32xf32>
    %371 = arith.divf %369, %370 : vector<8x32xf32>
    %372 = arith.mulf %363, %314 : vector<8x32xf32>
    %373 = arith.mulf %357, %365 : vector<8x32xf32>
    %374 = arith.addf %372, %373 : vector<8x32xf32>
    %375 = math.tanh %374 : vector<8x32xf32>
    %376 = arith.mulf %371, %375 : vector<8x32xf32>
    %377 = arith.truncf %347 : vector<8x32xf32> to vector<8x32xbf16>
    %cst_63 = arith.constant dense<0.000000e+00> : vector<8x128xf32>
    %378 = tpu.matmul %377, %9, %cst_63 {dimension_numbers = #tpu.dot_dimension_numbers<[1], [0], [0], [1], [0, 0, 1, 1], [], []>} : vector<8x32xbf16>, vector<32x128xbf16>, vector<8x128xf32> -> vector<8x128xf32>
    %379 = arith.truncf %316 : vector<8x32xf32> to vector<8x32xbf16>
    %cst_64 = arith.constant dense<0.000000e+00> : vector<8x128xf32>
    %380 = tpu.matmul %379, %10, %cst_64 {dimension_numbers = #tpu.dot_dimension_numbers<[1], [0], [0], [1], [0, 0, 1, 1], [], []>} : vector<8x32xbf16>, vector<32x128xbf16>, vector<8x128xf32> -> vector<8x128xf32>
    %381 = arith.addf %14, %380 : vector<8x128xf32>
    %382 = arith.addf %381, %378 : vector<8x128xf32>
    %383 = vector.extract_strided_slice %382 {offsets = [0, 0], sizes = [8, 32], strides = [1, 1]} : vector<8x128xf32> to vector<8x32xf32>
    %384 = arith.negf %383 : vector<8x32xf32>
    %385 = math.exp %384 : vector<8x32xf32>
    %cst_65 = arith.constant 1.000000e+00 : f32
    %386 = vector.broadcast %cst_65 : f32 to vector<8x32xf32>
    %387 = arith.addf %386, %385 : vector<8x32xf32>
    %388 = arith.divf %386, %387 : vector<8x32xf32>
    %389 = vector.extract_strided_slice %382 {offsets = [0, 32], sizes = [8, 32], strides = [1, 1]} : vector<8x128xf32> to vector<8x32xf32>
    %390 = arith.negf %389 : vector<8x32xf32>
    %391 = math.exp %390 : vector<8x32xf32>
    %cst_66 = arith.constant 1.000000e+00 : f32
    %392 = vector.broadcast %cst_66 : f32 to vector<8x32xf32>
    %393 = arith.addf %392, %391 : vector<8x32xf32>
    %394 = arith.divf %392, %393 : vector<8x32xf32>
    %395 = vector.extract_strided_slice %382 {offsets = [0, 64], sizes = [8, 32], strides = [1, 1]} : vector<8x128xf32> to vector<8x32xf32>
    %396 = math.tanh %395 : vector<8x32xf32>
    %397 = vector.extract_strided_slice %382 {offsets = [0, 96], sizes = [8, 32], strides = [1, 1]} : vector<8x128xf32> to vector<8x32xf32>
    %398 = arith.negf %397 : vector<8x32xf32>
    %399 = math.exp %398 : vector<8x32xf32>
    %cst_67 = arith.constant 1.000000e+00 : f32
    %400 = vector.broadcast %cst_67 : f32 to vector<8x32xf32>
    %401 = arith.addf %400, %399 : vector<8x32xf32>
    %402 = arith.divf %400, %401 : vector<8x32xf32>
    %403 = arith.mulf %394, %345 : vector<8x32xf32>
    %404 = arith.mulf %388, %396 : vector<8x32xf32>
    %405 = arith.addf %403, %404 : vector<8x32xf32>
    %406 = math.tanh %405 : vector<8x32xf32>
    %407 = arith.mulf %402, %406 : vector<8x32xf32>
    %408 = arith.truncf %376 : vector<8x32xf32> to vector<8x32xbf16>
    %cst_68 = arith.constant dense<0.000000e+00> : vector<8x128xf32>
    %409 = tpu.matmul %408, %8, %cst_68 {dimension_numbers = #tpu.dot_dimension_numbers<[1], [0], [0], [1], [0, 0, 1, 1], [], []>} : vector<8x32xbf16>, vector<32x128xbf16>, vector<8x128xf32> -> vector<8x128xf32>
    %410 = vector.extract_strided_slice %7 {offsets = [56, 0], sizes = [8, 128], strides = [1, 1]} : vector<64x128xf32> to vector<8x128xf32>
    %411 = arith.addf %410, %409 : vector<8x128xf32>
    %412 = vector.extract_strided_slice %411 {offsets = [0, 0], sizes = [8, 32], strides = [1, 1]} : vector<8x128xf32> to vector<8x32xf32>
    %413 = arith.negf %412 : vector<8x32xf32>
    %414 = math.exp %413 : vector<8x32xf32>
    %cst_69 = arith.constant 1.000000e+00 : f32
    %415 = vector.broadcast %cst_69 : f32 to vector<8x32xf32>
    %416 = arith.addf %415, %414 : vector<8x32xf32>
    %417 = arith.divf %415, %416 : vector<8x32xf32>
    %418 = vector.extract_strided_slice %411 {offsets = [0, 32], sizes = [8, 32], strides = [1, 1]} : vector<8x128xf32> to vector<8x32xf32>
    %419 = arith.negf %418 : vector<8x32xf32>
    %420 = math.exp %419 : vector<8x32xf32>
    %cst_70 = arith.constant 1.000000e+00 : f32
    %421 = vector.broadcast %cst_70 : f32 to vector<8x32xf32>
    %422 = arith.addf %421, %420 : vector<8x32xf32>
    %423 = arith.divf %421, %422 : vector<8x32xf32>
    %424 = vector.extract_strided_slice %411 {offsets = [0, 64], sizes = [8, 32], strides = [1, 1]} : vector<8x128xf32> to vector<8x32xf32>
    %425 = math.tanh %424 : vector<8x32xf32>
    %426 = vector.extract_strided_slice %411 {offsets = [0, 96], sizes = [8, 32], strides = [1, 1]} : vector<8x128xf32> to vector<8x32xf32>
    %427 = arith.negf %426 : vector<8x32xf32>
    %428 = math.exp %427 : vector<8x32xf32>
    %cst_71 = arith.constant 1.000000e+00 : f32
    %429 = vector.broadcast %cst_71 : f32 to vector<8x32xf32>
    %430 = arith.addf %429, %428 : vector<8x32xf32>
    %431 = arith.divf %429, %430 : vector<8x32xf32>
    %432 = arith.mulf %423, %374 : vector<8x32xf32>
    %433 = arith.mulf %417, %425 : vector<8x32xf32>
    %434 = arith.addf %432, %433 : vector<8x32xf32>
    %435 = math.tanh %434 : vector<8x32xf32>
    %436 = arith.mulf %431, %435 : vector<8x32xf32>
    %437 = arith.truncf %407 : vector<8x32xf32> to vector<8x32xbf16>
    %cst_72 = arith.constant dense<0.000000e+00> : vector<8x128xf32>
    %438 = tpu.matmul %437, %9, %cst_72 {dimension_numbers = #tpu.dot_dimension_numbers<[1], [0], [0], [1], [0, 0, 1, 1], [], []>} : vector<8x32xbf16>, vector<32x128xbf16>, vector<8x128xf32> -> vector<8x128xf32>
    %439 = arith.truncf %376 : vector<8x32xf32> to vector<8x32xbf16>
    %cst_73 = arith.constant dense<0.000000e+00> : vector<8x128xf32>
    %440 = tpu.matmul %439, %10, %cst_73 {dimension_numbers = #tpu.dot_dimension_numbers<[1], [0], [0], [1], [0, 0, 1, 1], [], []>} : vector<8x32xbf16>, vector<32x128xbf16>, vector<8x128xf32> -> vector<8x128xf32>
    %441 = arith.addf %14, %440 : vector<8x128xf32>
    %442 = arith.addf %441, %438 : vector<8x128xf32>
    %443 = vector.extract_strided_slice %442 {offsets = [0, 0], sizes = [8, 32], strides = [1, 1]} : vector<8x128xf32> to vector<8x32xf32>
    %444 = arith.negf %443 : vector<8x32xf32>
    %445 = math.exp %444 : vector<8x32xf32>
    %cst_74 = arith.constant 1.000000e+00 : f32
    %446 = vector.broadcast %cst_74 : f32 to vector<8x32xf32>
    %447 = arith.addf %446, %445 : vector<8x32xf32>
    %448 = arith.divf %446, %447 : vector<8x32xf32>
    %449 = vector.extract_strided_slice %442 {offsets = [0, 32], sizes = [8, 32], strides = [1, 1]} : vector<8x128xf32> to vector<8x32xf32>
    %450 = arith.negf %449 : vector<8x32xf32>
    %451 = math.exp %450 : vector<8x32xf32>
    %cst_75 = arith.constant 1.000000e+00 : f32
    %452 = vector.broadcast %cst_75 : f32 to vector<8x32xf32>
    %453 = arith.addf %452, %451 : vector<8x32xf32>
    %454 = arith.divf %452, %453 : vector<8x32xf32>
    %455 = vector.extract_strided_slice %442 {offsets = [0, 64], sizes = [8, 32], strides = [1, 1]} : vector<8x128xf32> to vector<8x32xf32>
    %456 = math.tanh %455 : vector<8x32xf32>
    %457 = vector.extract_strided_slice %442 {offsets = [0, 96], sizes = [8, 32], strides = [1, 1]} : vector<8x128xf32> to vector<8x32xf32>
    %458 = arith.negf %457 : vector<8x32xf32>
    %459 = math.exp %458 : vector<8x32xf32>
    %cst_76 = arith.constant 1.000000e+00 : f32
    %460 = vector.broadcast %cst_76 : f32 to vector<8x32xf32>
    %461 = arith.addf %460, %459 : vector<8x32xf32>
    %462 = arith.divf %460, %461 : vector<8x32xf32>
    %463 = arith.mulf %454, %405 : vector<8x32xf32>
    %464 = arith.mulf %448, %456 : vector<8x32xf32>
    %465 = arith.addf %463, %464 : vector<8x32xf32>
    %466 = math.tanh %465 : vector<8x32xf32>
    %467 = arith.mulf %462, %466 : vector<8x32xf32>
    %468 = arith.truncf %467 : vector<8x32xf32> to vector<8x32xbf16>
    %cst_77 = arith.constant dense<0.000000e+00> : vector<8x128xf32>
    %469 = tpu.matmul %468, %9, %cst_77 {dimension_numbers = #tpu.dot_dimension_numbers<[1], [0], [0], [1], [0, 0, 1, 1], [], []>} : vector<8x32xbf16>, vector<32x128xbf16>, vector<8x128xf32> -> vector<8x128xf32>
    %470 = arith.truncf %436 : vector<8x32xf32> to vector<8x32xbf16>
    %cst_78 = arith.constant dense<0.000000e+00> : vector<8x128xf32>
    %471 = tpu.matmul %470, %10, %cst_78 {dimension_numbers = #tpu.dot_dimension_numbers<[1], [0], [0], [1], [0, 0, 1, 1], [], []>} : vector<8x32xbf16>, vector<32x128xbf16>, vector<8x128xf32> -> vector<8x128xf32>
    %472 = arith.addf %14, %471 : vector<8x128xf32>
    %473 = arith.addf %472, %469 : vector<8x128xf32>
    %474 = vector.extract_strided_slice %473 {offsets = [0, 0], sizes = [8, 32], strides = [1, 1]} : vector<8x128xf32> to vector<8x32xf32>
    %475 = arith.negf %474 : vector<8x32xf32>
    %476 = math.exp %475 : vector<8x32xf32>
    %cst_79 = arith.constant 1.000000e+00 : f32
    %477 = vector.broadcast %cst_79 : f32 to vector<8x32xf32>
    %478 = arith.addf %477, %476 : vector<8x32xf32>
    %479 = arith.divf %477, %478 : vector<8x32xf32>
    %480 = vector.extract_strided_slice %473 {offsets = [0, 32], sizes = [8, 32], strides = [1, 1]} : vector<8x128xf32> to vector<8x32xf32>
    %481 = arith.negf %480 : vector<8x32xf32>
    %482 = math.exp %481 : vector<8x32xf32>
    %cst_80 = arith.constant 1.000000e+00 : f32
    %483 = vector.broadcast %cst_80 : f32 to vector<8x32xf32>
    %484 = arith.addf %483, %482 : vector<8x32xf32>
    %485 = arith.divf %483, %484 : vector<8x32xf32>
    %486 = vector.extract_strided_slice %473 {offsets = [0, 64], sizes = [8, 32], strides = [1, 1]} : vector<8x128xf32> to vector<8x32xf32>
    %487 = math.tanh %486 : vector<8x32xf32>
    %488 = vector.extract_strided_slice %473 {offsets = [0, 96], sizes = [8, 32], strides = [1, 1]} : vector<8x128xf32> to vector<8x32xf32>
    %489 = arith.negf %488 : vector<8x32xf32>
    %490 = math.exp %489 : vector<8x32xf32>
    %cst_81 = arith.constant 1.000000e+00 : f32
    %491 = vector.broadcast %cst_81 : f32 to vector<8x32xf32>
    %492 = arith.addf %491, %490 : vector<8x32xf32>
    %493 = arith.divf %491, %492 : vector<8x32xf32>
    %494 = arith.mulf %485, %465 : vector<8x32xf32>
    %495 = arith.mulf %479, %487 : vector<8x32xf32>
    %496 = arith.addf %494, %495 : vector<8x32xf32>
    %497 = math.tanh %496 : vector<8x32xf32>
    %498 = arith.mulf %493, %497 : vector<8x32xf32>
    %499 = arith.truncf %498 : vector<8x32xf32> to vector<8x32xbf16>
    %cst_82 = arith.constant dense<0.000000e+00> : vector<8x128xf32>
    %500 = tpu.matmul %499, %11, %cst_82 {dimension_numbers = #tpu.dot_dimension_numbers<[1], [0], [0], [1], [0, 0, 1, 1], [], []>} : vector<8x32xbf16>, vector<32x128xbf16>, vector<8x128xf32> -> vector<8x128xf32>
    %c2 = arith.constant 2 : index
    %c0_83 = arith.constant 0 : index
    %501 = vector.load %arg2[%c2, %c0_83] : memref<3x128xf32, #tpu.memory_space<vmem>>, vector<1x128xf32>
    %502 = vector.broadcast %501 : vector<1x128xf32> to vector<8x128xf32>
    %503 = arith.addf %500, %502 : vector<8x128xf32>
    %c0_84 = arith.constant 0 : index
    %c0_85 = arith.constant 0 : index
    %504 = vector.load %arg3[%c0_84, %c0_85] : memref<8x128xf32, #tpu.memory_space<vmem>>, vector<8x128xf32>
    tpu.vector_store %arg3[%c0_84, %c0_85], %503 {strides = array<i32>} : memref<8x128xf32, #tpu.memory_space<vmem>>, vector<8x128xf32>,
    return
  }
}

</mosaic_0001>

<llo_original>
// kernel: lstm_forward.1
$region0: #{lstm_forward.1}
  #allocation0 [shape = 'u32[]', space=smem, size = 0x4, offset = 0x4, fixed_abs, tag = 'smem constant byte address 0x4 - core index']
  #allocation1 [shape = 'u32[144,128]{1,0:T(1,128)}', space=vmem, size = 0x12000, scoped, tag = 'internal scratch']
  %s0 = inlined_call_operand.vmem [shape: f32[64,16], index: 0, kind: input, shape index: {}]
  %s1 = inlined_call_operand.vmem [shape: bf16[144,128], index: 1, kind: input, shape index: {}]
  %s2 = inlined_call_operand.vmem [shape: f32[3,128], index: 2, kind: input, shape index: {}]
  %s3 = inlined_call_operand.vmem [shape: f32[8,128], index: 3, kind: output, shape index: {}]
  %s4 = sld [smem:[#allocation0]]
  $region22: #{lstm_forward.1} parent=0
    _
  %s6 = ssub.s32 1, %s4
  %s7 = scalar_select 0, %s6, %s4
  // Predicated region
  $region2: #{lstm_forward.1} parent=0 // pred_check
    _
  $region3: #{lstm_forward.1} parent=0 // pred_check_branch
    %9 = sbr.rel (0) target = $region5
  $region4: #{lstm_forward.1} parent=0 // pred_region
    _
  $region5: #{lstm_forward.1} parent=0 // pred_fallthru
    _
  // Predicated region
  $region6: #{lstm_forward.1} parent=0 // pred_check
    _
  $region7: #{lstm_forward.1} parent=0 // pred_check_branch
    %11 = sbr.rel (0) target = $region9
  $region8: #{lstm_forward.1} parent=0 // pred_region
    _
  $region9: #{lstm_forward.1} parent=0 // pred_fallthru
    _
  // Predicated region
  $region10: #{lstm_forward.1} parent=0 // pred_check
    _
  $region11: #{lstm_forward.1} parent=0 // pred_check_branch
    %13 = sbr.rel (0) target = $region13
  $region12: #{lstm_forward.1} parent=0 // pred_region
    _
  $region13: #{lstm_forward.1} parent=0 // pred_fallthru
    _
  %v15 = vld [vmem:[%s1] sm:$0xf]
  %v16 = vld [vmem:[%s1 + $0x4] sm:$0xf]
  %v17 = vld [vmem:[%s1 + $0x8] sm:$0xf]
  %v18 = vld [vmem:[%s1 + $0xc] sm:$0xf]
  %v19 = vld [vmem:[%s1 + $0x10] sm:$0xf]
  %v20 = vld [vmem:[%s1 + $0x14] sm:$0xf]
  %v21 = vld [vmem:[%s1 + $0x18] sm:$0xf]
  %v22 = vld [vmem:[%s1 + $0x1c] sm:$0xf]
  %v23 = vld [vmem:[%s1 + $0x20] sm:$0xf]
  %v24 = vld [vmem:[%s1 + $0x24] sm:$0xf]
  %v25 = vld [vmem:[%s1 + $0x28] sm:$0xf]
  %v26 = vld [vmem:[%s1 + $0x2c] sm:$0xf]
  %v27 = vld [vmem:[%s1 + $0x30] sm:$0xf]
  %v28 = vld [vmem:[%s1 + $0x34] sm:$0xf]
  %v29 = vld [vmem:[%s1 + $0x38] sm:$0xf]
  %v30 = vld [vmem:[%s1 + $0x3c] sm:$0xf]
  %v31 = vld [vmem:[%s1 + $0x40] sm:$0xf]
  %v32 = vld [vmem:[%s1 + $0x44] sm:$0xf]
  %v33 = vld [vmem:[%s0] sm:$0xff]
  %v34 = vld [vmem:[%s0 + $0x8] sm:$0xff]
  %v35 = vld [vmem:[%s0 + $0x10] sm:$0xff]
  %v36 = vld [vmem:[%s0 + $0x18] sm:$0xff]
  %v37 = vld [vmem:[%s0 + $0x20] sm:$0xff]
  %v38 = vld [vmem:[%s0 + $0x28] sm:$0xff]
  %v39 = vld [vmem:[%s0 + $0x30] sm:$0xff]
  %v40 = vld [vmem:[%s0 + $0x38] sm:$0xff]
  %v41 = vpack.c.bf16 %v34, %v33
  %v42 = vpack.c.bf16 %v36, %v35
  %v43 = vpack.c.bf16 %v38, %v37
  %v44 = vpack.c.bf16 %v40, %v39
  %v45 = vld [vmem:[%s2] sm:$0x1]
  %v46 = vlaneseq
  %v47 = vshrl.u32 %v46, 7
  %v48 = vsub.s32 0, %v47
  %v49 = vrot.slane %v45, %v48
  %v52 = vunpack.c.l.b16 %v15
  %v53 = vunpack.c.l.b16 %v16
  %v54 = vpack.c.b16 %v53, %v52
  %vm56 = vcmask 130048
  %v58 = vsel %vm56, %v41, 0
  %v61 = vsel %vm56, %v42, 0
  %v64 = vsel %vm56, %v43, 0
  %v67 = vsel %vm56, %v44, 0
  %69 = vmatprep.subr.bf16.mxu0 0
  %70 = vmatpush1.bf16.msra.mxu0 %v54
  %71 = vmatprep.subr.bf16.mxu0 0
  %72 = vmatpush1.bf16.msra.mxu0 0
  %73 = vmatprep.subr.bf16.mxu0 0
  %74 = vmatpush1.bf16.msra.mxu0 0
  %75 = vmatprep.subr.bf16.mxu0 0
  %76 = vmatpush1.bf16.msra.mxu0 0
  %77 = vmatprep.subr.bf16.mxu0 0
  %78 = vmatpush1.bf16.msra.mxu0 0
  %79 = vmatprep.subr.bf16.mxu0 0
  %80 = vmatpush1.bf16.msra.mxu0 0
  %81 = vmatprep.subr.bf16.mxu0 0
  %82 = vmatpush1.bf16.msra.mxu0 0
  %83 = vmatprep.subr.bf16.mxu0 0
  %84 = vmatpush1.bf16.msra.mxu0 0
  %85 = vmatprep.subr.bf16.mxu0 0
  %86 = vmatpush1.bf16.msra.mxu0 0
  %87 = vmatprep.subr.bf16.mxu0 0
  %88 = vmatpush1.bf16.msra.mxu0 0
  %89 = vmatprep.subr.bf16.mxu0 0
  %90 = vmatpush1.bf16.msra.mxu0 0
  %91 = vmatprep.subr.bf16.mxu0 0
  %92 = vmatpush1.bf16.msra.mxu0 0
  %93 = vmatprep.subr.bf16.mxu0 0
  %94 = vmatpush1.bf16.msra.mxu0 0
  %95 = vmatprep.subr.bf16.mxu0 0
  %96 = vmatpush1.bf16.msra.mxu0 0
  %97 = vmatprep.subr.bf16.mxu0 0
  %98 = vmatpush1.bf16.msra.mxu0 0
  %99 = vmatprep.subr.bf16.mxu0 0
  %100 = vmatpush1.bf16.msra.mxu0 0
  %101 = vmatprep.mubr.bf16.mxu0 0
  %102 = vmatmul.mubr.bf16.gmra.mrb[0].mxu0 %v58
  %v103 = vpop.f32.mrb[0].mxu0
  %v104 = vadd.f32 %v49, %v103
  %v105 = vpop.f32.mrb[0].mxu0
  %v106 = vpop.f32.mrb[0].mxu0
  %v107 = vadd.f32 %v49, %v106
  %v108 = vpop.f32.mrb[0].mxu0
  %109 = vmatprep.mubr.bf16.mxu0 0
  %110 = vmatmul.mubr.bf16.gmra.mrb[0].mxu0 %v61
  %v111 = vpop.f32.mrb[0].mxu0
  %v112 = vadd.f32 %v49, %v111
  %v113 = vpop.f32.mrb[0].mxu0
  %v114 = vpop.f32.mrb[0].mxu0
  %v115 = vadd.f32 %v49, %v114
  %v116 = vpop.f32.mrb[0].mxu0
  %117 = vmatprep.mubr.bf16.mxu0 0
  %118 = vmatmul.mubr.bf16.gmra.mrb[0].mxu0 %v64
  %v119 = vpop.f32.mrb[0].mxu0
  %v120 = vadd.f32 %v49, %v119
  %v121 = vpop.f32.mrb[0].mxu0
  %v122 = vpop.f32.mrb[0].mxu0
  %v123 = vadd.f32 %v49, %v122
  %v124 = vpop.f32.mrb[0].mxu0
  %125 = vmatprep.mubr.bf16.mxu0 0
  %126 = vmatmul.mubr.bf16.gmra.mrb[0].mxu0 %v67
  %v127 = vpop.f32.mrb[0].mxu0
  %v128 = vadd.f32 %v49, %v127
  %v129 = vpop.f32.mrb[0].mxu0
  %v130 = vpop.f32.mrb[0].mxu0
  %v131 = vadd.f32 %v49, %v130
  %v132 = vpop.f32.mrb[0].mxu0
  %133 = vdwg.mxu0
  %v134 = vld [vmem:[%s2 + $0x1] sm:$0x1]
  %v135 = vlaneseq
  %v136 = vshrl.u32 %v135, 7
  %v137 = vsub.s32 0, %v136
  %v138 = vrot.slane %v134, %v137
  %v143 = vunpack.c.l.b16 %v17
  %v144 = vunpack.c.l.b16 %v18
  %v145 = vunpack.c.l.b16 %v19
  %v146 = vunpack.c.l.b16 %v20
  %v147 = vpack.c.b16 %v144, %v143
  %v148 = vpack.c.b16 %v146, %v145
  %vm151 = vcmask 261120
  %v153 = vsel %vm151, 0, 0
  %155 = vmatprep.subr.bf16.mxu0 0
  %156 = vmatpush1.bf16.msra.mxu0 %v147
  %157 = vmatprep.subr.bf16.mxu0 0
  %158 = vmatpush1.bf16.msra.mxu0 %v148
  %159 = vmatprep.subr.bf16.mxu0 0
  %160 = vmatpush1.bf16.msra.mxu0 0
  %161 = vmatprep.subr.bf16.mxu0 0
  %162 = vmatpush1.bf16.msra.mxu0 0
  %163 = vmatprep.subr.bf16.mxu0 0
  %164 = vmatpush1.bf16.msra.mxu0 0
  %165 = vmatprep.subr.bf16.mxu0 0
  %166 = vmatpush1.bf16.msra.mxu0 0
  %167 = vmatprep.subr.bf16.mxu0 0
  %168 = vmatpush1.bf16.msra.mxu0 0
  %169 = vmatprep.subr.bf16.mxu0 0
  %170 = vmatpush1.bf16.msra.mxu0 0
  %171 = vmatprep.subr.bf16.mxu0 0
  %172 = vmatpush1.bf16.msra.mxu0 0
  %173 = vmatprep.subr.bf16.mxu0 0
  %174 = vmatpush1.bf16.msra.mxu0 0
  %175 = vmatprep.subr.bf16.mxu0 0
  %176 = vmatpush1.bf16.msra.mxu0 0
  %177 = vmatprep.subr.bf16.mxu0 0
  %178 = vmatpush1.bf16.msra.mxu0 0
  %179 = vmatprep.subr.bf16.mxu0 0
  %180 = vmatpush1.bf16.msra.mxu0 0
  %181 = vmatprep.subr.bf16.mxu0 0
  %182 = vmatpush1.bf16.msra.mxu0 0
  %183 = vmatprep.subr.bf16.mxu0 0
  %184 = vmatpush1.bf16.msra.mxu0 0
  %185 = vmatprep.subr.bf16.mxu0 0
  %186 = vmatpush1.bf16.msra.mxu0 0
  %187 = vmatprep.mubr.bf16.mxu0 0
  %188 = vmatmul.mubr.bf16.gmra.mrb[0].mxu0 %v153
  %v189 = vpop.f32.mrb[0].mxu0
  %v190 = vadd.f32 0.0, %v189
  %v191 = vpop.f32.mrb[0].mxu0
  %v192 = vpop.f32.mrb[0].mxu0
  %v193 = vpop.f32.mrb[0].mxu0
  %194 = vdwg.mxu0
  %v195 = vadd.f32 %v104, %v190
  %v196 = vxor.u32 %v195, 2147483648
  %v197 = vmul.f32 %v196, 1.442695
  %v198 = vpow.pop %v197
  %v199 = vadd.f32 %v198, 1.0
  %v200 = vrcp.pop %v199
  %v201 = vmul.f32 1.0, %v200
  %v202 = vtanh.pop %v195
  %v203 = vmul.f32 %v201, 0.0
  %205 = vrot.lane.b32.xlu0 %v202, 64
  %v206 = vpop.permute.xlu0 %205
  %v208 = vmul.f32 %v201, %v206
  %210 = vrot.lane.b32.xlu0 %v208, 32
  %v211 = vpop.permute.xlu0 %210
  %v213 = vadd.f32 %v203, %v211
  %v214 = vtanh.pop %v213
  %216 = vrot.lane.b32.xlu0 %v214, 64
  %v217 = vpop.permute.xlu0 %216
  %v219 = vmul.f32 %v201, %v217
  %v220 = vpack.c.bf16 %v219, %v219
  %222 = vrot.lane.b32.xlu0 %v220, 32
  %v223 = vpop.permute.xlu0 %222
  %v225 = vsel %vm151, %v223, 0
  %227 = vmatprep.subr.bf16.mxu0 0
  %228 = vmatpush1.bf16.msra.mxu0 %v147
  %229 = vmatprep.subr.bf16.mxu0 0
  %230 = vmatpush1.bf16.msra.mxu0 %v148
  %231 = vmatprep.subr.bf16.mxu0 0
  %232 = vmatpush1.bf16.msra.mxu0 0
  %233 = vmatprep.subr.bf16.mxu0 0
  %234 = vmatpush1.bf16.msra.mxu0 0
  %235 = vmatprep.subr.bf16.mxu0 0
  %236 = vmatpush1.bf16.msra.mxu0 0
  %237 = vmatprep.subr.bf16.mxu0 0
  %238 = vmatpush1.bf16.msra.mxu0 0
  %239 = vmatprep.subr.bf16.mxu0 0
  %240 = vmatpush1.bf16.msra.mxu0 0
  %241 = vmatprep.subr.bf16.mxu0 0
  %242 = vmatpush1.bf16.msra.mxu0 0
  %243 = vmatprep.subr.bf16.mxu0 0
  %244 = vmatpush1.bf16.msra.mxu0 0
  %245 = vmatprep.subr.bf16.mxu0 0
  %246 = vmatpush1.bf16.msra.mxu0 0
  %247 = vmatprep.subr.bf16.mxu0 0
  %248 = vmatpush1.bf16.msra.mxu0 0
  %249 = vmatprep.subr.bf16.mxu0 0
  %250 = vmatpush1.bf16.msra.mxu0 0
  %251 = vmatprep.subr.bf16.mxu0 0
  %252 = vmatpush1.bf16.msra.mxu0 0
  %253 = vmatprep.subr.bf16.mxu0 0
  %254 = vmatpush1.bf16.msra.mxu0 0
  %255 = vmatprep.subr.bf16.mxu0 0
  %256 = vmatpush1.bf16.msra.mxu0 0
  %257 = vmatprep.subr.bf16.mxu0 0
  %258 = vmatpush1.bf16.msra.mxu0 0
  %259 = vmatprep.mubr.bf16.mxu0 0
  %260 = vmatmul.mubr.bf16.gmra.mrb[0].mxu0 %v225
  %v261 = vpop.f32.mrb[0].mxu0
  %v262 = vadd.f32 0.0, %v261
  %v263 = vpop.f32.mrb[0].mxu0
  %v264 = vpop.f32.mrb[0].mxu0
  %v265 = vpop.f32.mrb[0].mxu0
  %266 = vdwg.mxu0
  %v267 = vadd.f32 %v107, %v262
  %v268 = vxor.u32 %v267, 2147483648
  %v269 = vmul.f32 %v268, 1.442695
  %v270 = vpow.pop %v269
  %v271 = vadd.f32 %v270, 1.0
  %v272 = vrcp.pop %v271
  %v273 = vmul.f32 1.0, %v272
  %v274 = vtanh.pop %v267
  %v275 = vmul.f32 %v273, %v213
  %277 = vrot.lane.b32.xlu0 %v274, 64
  %v278 = vpop.permute.xlu0 %277
  %v280 = vmul.f32 %v273, %v278
  %282 = vrot.lane.b32.xlu0 %v280, 32
  %v283 = vpop.permute.xlu0 %282
  %v285 = vadd.f32 %v275, %v283
  %v286 = vtanh.pop %v285
  %288 = vrot.lane.b32.xlu0 %v286, 64
  %v289 = vpop.permute.xlu0 %288
  %v291 = vmul.f32 %v273, %v289
  %v296 = vunpack.c.l.b16 %v25
  %v297 = vunpack.c.l.b16 %v26
  %v298 = vunpack.c.l.b16 %v27
  %v299 = vunpack.c.l.b16 %v28
  %v300 = vpack.c.b16 %v297, %v296
  %v301 = vpack.c.b16 %v299, %v298
  %304 = vmatprep.subr.bf16.mxu0 0
  %305 = vmatpush1.bf16.msra.mxu0 %v300
  %306 = vmatprep.subr.bf16.mxu0 0
  %307 = vmatpush1.bf16.msra.mxu0 %v301
  %308 = vmatprep.subr.bf16.mxu0 0
  %309 = vmatpush1.bf16.msra.mxu0 0
  %310 = vmatprep.subr.bf16.mxu0 0
  %311 = vmatpush1.bf16.msra.mxu0 0
  %312 = vmatprep.subr.bf16.mxu0 0
  %313 = vmatpush1.bf16.msra.mxu0 0
  %314 = vmatprep.subr.bf16.mxu0 0
  %315 = vmatpush1.bf16.msra.mxu0 0
  %316 = vmatprep.subr.bf16.mxu0 0
  %317 = vmatpush1.bf16.msra.mxu0 0
  %318 = vmatprep.subr.bf16.mxu0 0
  %319 = vmatpush1.bf16.msra.mxu0 0
  %320 = vmatprep.subr.bf16.mxu0 0
  %321 = vmatpush1.bf16.msra.mxu0 0
  %322 = vmatprep.subr.bf16.mxu0 0
  %323 = vmatpush1.bf16.msra.mxu0 0
  %324 = vmatprep.subr.bf16.mxu0 0
  %325 = vmatpush1.bf16.msra.mxu0 0
  %326 = vmatprep.subr.bf16.mxu0 0
  %327 = vmatpush1.bf16.msra.mxu0 0
  %328 = vmatprep.subr.bf16.mxu0 0
  %329 = vmatpush1.bf16.msra.mxu0 0
  %330 = vmatprep.subr.bf16.mxu0 0
  %331 = vmatpush1.bf16.msra.mxu0 0
  %332 = vmatprep.subr.bf16.mxu0 0
  %333 = vmatpush1.bf16.msra.mxu0 0
  %334 = vmatprep.subr.bf16.mxu0 0
  %335 = vmatpush1.bf16.msra.mxu0 0
  %336 = vmatprep.mubr.bf16.mxu0 0
  %337 = vmatmul.mubr.bf16.gmra.mrb[0].mxu0 %v153
  %v338 = vpop.f32.mrb[0].mxu0
  %v339 = vadd.f32 0.0, %v338
  %v340 = vpop.f32.mrb[0].mxu0
  %v341 = vpop.f32.mrb[0].mxu0
  %v342 = vpop.f32.mrb[0].mxu0
  %343 = vdwg.mxu0
  %v348 = vunpack.c.l.b16 %v21
  %v349 = vunpack.c.l.b16 %v22
  %v350 = vunpack.c.l.b16 %v23
  %v351 = vunpack.c.l.b16 %v24
  %v352 = vpack.c.b16 %v349, %v348
  %v353 = vpack.c.b16 %v351, %v350
  %356 = vmatprep.subr.bf16.mxu0 0
  %357 = vmatpush1.bf16.msra.mxu0 %v352
  %358 = vmatprep.subr.bf16.mxu0 0
  %359 = vmatpush1.bf16.msra.mxu0 %v353
  %360 = vmatprep.subr.bf16.mxu0 0
  %361 = vmatpush1.bf16.msra.mxu0 0
  %362 = vmatprep.subr.bf16.mxu0 0
  %363 = vmatpush1.bf16.msra.mxu0 0
  %364 = vmatprep.subr.bf16.mxu0 0
  %365 = vmatpush1.bf16.msra.mxu0 0
  %366 = vmatprep.subr.bf16.mxu0 0
  %367 = vmatpush1.bf16.msra.mxu0 0
  %368 = vmatprep.subr.bf16.mxu0 0
  %369 = vmatpush1.bf16.msra.mxu0 0
  %370 = vmatprep.subr.bf16.mxu0 0
  %371 = vmatpush1.bf16.msra.mxu0 0
  %372 = vmatprep.subr.bf16.mxu0 0
  %373 = vmatpush1.bf16.msra.mxu0 0
  %374 = vmatprep.subr.bf16.mxu0 0
  %375 = vmatpush1.bf16.msra.mxu0 0
  %376 = vmatprep.subr.bf16.mxu0 0
  %377 = vmatpush1.bf16.msra.mxu0 0
  %378 = vmatprep.subr.bf16.mxu0 0
  %379 = vmatpush1.bf16.msra.mxu0 0
  %380 = vmatprep.subr.bf16.mxu0 0
  %381 = vmatpush1.bf16.msra.mxu0 0
  %382 = vmatprep.subr.bf16.mxu0 0
  %383 = vmatpush1.bf16.msra.mxu0 0
  %384 = vmatprep.subr.bf16.mxu0 0
  %385 = vmatpush1.bf16.msra.mxu0 0
  %386 = vmatprep.subr.bf16.mxu0 0
  %387 = vmatpush1.bf16.msra.mxu0 0
  %388 = vmatprep.mubr.bf16.mxu0 0
  %389 = vmatmul.mubr.bf16.gmra.mrb[0].mxu0 %v225
  %v390 = vpop.f32.mrb[0].mxu0
  %v391 = vadd.f32 0.0, %v390
  %v392 = vpop.f32.mrb[0].mxu0
  %v393 = vpop.f32.mrb[0].mxu0
  %v394 = vpop.f32.mrb[0].mxu0
  %395 = vdwg.mxu0
  %v396 = vadd.f32 %v138, %v391
  %v397 = vadd.f32 %v396, %v339
  %v398 = vxor.u32 %v397, 2147483648
  %v399 = vmul.f32 %v398, 1.442695
  %v400 = vpow.pop %v399
  %v401 = vadd.f32 %v400, 1.0
  %v402 = vrcp.pop %v401
  %v403 = vmul.f32 1.0, %v402
  %v404 = vtanh.pop %v397
  %v405 = vmul.f32 %v403, 0.0
  %407 = vrot.lane.b32.xlu0 %v404, 64
  %v408 = vpop.permute.xlu0 %407
  %v410 = vmul.f32 %v403, %v408
  %412 = vrot.lane.b32.xlu0 %v410, 32
  %v413 = vpop.permute.xlu0 %412
  %v415 = vadd.f32 %v405, %v413
  %v416 = vtanh.pop %v415
  %418 = vrot.lane.b32.xlu0 %v416, 64
  %v419 = vpop.permute.xlu0 %418
  %v421 = vmul.f32 %v403, %v419
  %v422 = vpack.c.bf16 %v291, %v291
  %424 = vrot.lane.b32.xlu0 %v422, 32
  %v425 = vpop.permute.xlu0 %424
  %v427 = vsel %vm151, %v425, 0
  %429 = vmatprep.subr.bf16.mxu0 0
  %430 = vmatpush1.bf16.msra.mxu0 %v147
  %431 = vmatprep.subr.bf16.mxu0 0
  %432 = vmatpush1.bf16.msra.mxu0 %v148
  %433 = vmatprep.subr.bf16.mxu0 0
  %434 = vmatpush1.bf16.msra.mxu0 0
  %435 = vmatprep.subr.bf16.mxu0 0
  %436 = vmatpush1.bf16.msra.mxu0 0
  %437 = vmatprep.subr.bf16.mxu0 0
  %438 = vmatpush1.bf16.msra.mxu0 0
  %439 = vmatprep.subr.bf16.mxu0 0
  %440 = vmatpush1.bf16.msra.mxu0 0
  %441 = vmatprep.subr.bf16.mxu0 0
  %442 = vmatpush1.bf16.msra.mxu0 0
  %443 = vmatprep.subr.bf16.mxu0 0
  %444 = vmatpush1.bf16.msra.mxu0 0
  %445 = vmatprep.subr.bf16.mxu0 0
  %446 = vmatpush1.bf16.msra.mxu0 0
  %447 = vmatprep.subr.bf16.mxu0 0
  %448 = vmatpush1.bf16.msra.mxu0 0
  %449 = vmatprep.subr.bf16.mxu0 0
  %450 = vmatpush1.bf16.msra.mxu0 0
  %451 = vmatprep.subr.bf16.mxu0 0
  %452 = vmatpush1.bf16.msra.mxu0 0
  %453 = vmatprep.subr.bf16.mxu0 0
  %454 = vmatpush1.bf16.msra.mxu0 0
  %455 = vmatprep.subr.bf16.mxu0 0
  %456 = vmatpush1.bf16.msra.mxu0 0
  %457 = vmatprep.subr.bf16.mxu0 0
  %458 = vmatpush1.bf16.msra.mxu0 0
  %459 = vmatprep.subr.bf16.mxu0 0
  %460 = vmatpush1.bf16.msra.mxu0 0
  %461 = vmatprep.mubr.bf16.mxu0 0
  %462 = vmatmul.mubr.bf16.gmra.mrb[0].mxu0 %v427
  %v463 = vpop.f32.mrb[0].mxu0
  %v464 = vadd.f32 0.0, %v463
  %v465 = vpop.f32.mrb[0].mxu0
  %v466 = vpop.f32.mrb[0].mxu0
  %v467 = vpop.f32.mrb[0].mxu0
  %468 = vdwg.mxu0
  %v469 = vadd.f32 %v112, %v464
  %v470 = vxor.u32 %v469, 2147483648
  %v471 = vmul.f32 %v470, 1.442695
  %v472 = vpow.pop %v471
  %v473 = vadd.f32 %v472, 1.0
  %v474 = vrcp.pop %v473
  %v475 = vmul.f32 1.0, %v474
  %v476 = vtanh.pop %v469
  %v477 = vmul.f32 %v475, %v285
  %479 = vrot.lane.b32.xlu0 %v476, 64
  %v480 = vpop.permute.xlu0 %479
  %v482 = vmul.f32 %v475, %v480
  %484 = vrot.lane.b32.xlu0 %v482, 32
  %v485 = vpop.permute.xlu0 %484
  %v487 = vadd.f32 %v477, %v485
  %v488 = vtanh.pop %v487
  %490 = vrot.lane.b32.xlu0 %v488, 64
  %v491 = vpop.permute.xlu0 %490
  %v493 = vmul.f32 %v475, %v491
  %v494 = vpack.c.bf16 %v421, %v421
  %496 = vrot.lane.b32.xlu0 %v494, 32
  %v497 = vpop.permute.xlu0 %496
  %v499 = vsel %vm151, %v497, 0
  %501 = vmatprep.subr.bf16.mxu0 0
  %502 = vmatpush1.bf16.msra.mxu0 %v300
  %503 = vmatprep.subr.bf16.mxu0 0
  %504 = vmatpush1.bf16.msra.mxu0 %v301
  %505 = vmatprep.subr.bf16.mxu0 0
  %506 = vmatpush1.bf16.msra.mxu0 0
  %507 = vmatprep.subr.bf16.mxu0 0
  %508 = vmatpush1.bf16.msra.mxu0 0
  %509 = vmatprep.subr.bf16.mxu0 0
  %510 = vmatpush1.bf16.msra.mxu0 0
  %511 = vmatprep.subr.bf16.mxu0 0
  %512 = vmatpush1.bf16.msra.mxu0 0
  %513 = vmatprep.subr.bf16.mxu0 0
  %514 = vmatpush1.bf16.msra.mxu0 0
  %515 = vmatprep.subr.bf16.mxu0 0
  %516 = vmatpush1.bf16.msra.mxu0 0
  %517 = vmatprep.subr.bf16.mxu0 0
  %518 = vmatpush1.bf16.msra.mxu0 0
  %519 = vmatprep.subr.bf16.mxu0 0
  %520 = vmatpush1.bf16.msra.mxu0 0
  %521 = vmatprep.subr.bf16.mxu0 0
  %522 = vmatpush1.bf16.msra.mxu0 0
  %523 = vmatprep.subr.bf16.mxu0 0
  %524 = vmatpush1.bf16.msra.mxu0 0
  %525 = vmatprep.subr.bf16.mxu0 0
  %526 = vmatpush1.bf16.msra.mxu0 0
  %527 = vmatprep.subr.bf16.mxu0 0
  %528 = vmatpush1.bf16.msra.mxu0 0
  %529 = vmatprep.subr.bf16.mxu0 0
  %530 = vmatpush1.bf16.msra.mxu0 0
  %531 = vmatprep.subr.bf16.mxu0 0
  %532 = vmatpush1.bf16.msra.mxu0 0
  %533 = vmatprep.mubr.bf16.mxu0 0
  %534 = vmatmul.mubr.bf16.gmra.mrb[0].mxu0 %v499
  %v535 = vpop.f32.mrb[0].mxu0
  %v536 = vadd.f32 0.0, %v535
  %v537 = vpop.f32.mrb[0].mxu0
  %v538 = vpop.f32.mrb[0].mxu0
  %v539 = vpop.f32.mrb[0].mxu0
  %540 = vdwg.mxu0
  %541 = vmatprep.subr.bf16.mxu0 0
  %542 = vmatpush1.bf16.msra.mxu0 %v352
  %543 = vmatprep.subr.bf16.mxu0 0
  %544 = vmatpush1.bf16.msra.mxu0 %v353
  %545 = vmatprep.subr.bf16.mxu0 0
  %546 = vmatpush1.bf16.msra.mxu0 0
  %547 = vmatprep.subr.bf16.mxu0 0
  %548 = vmatpush1.bf16.msra.mxu0 0
  %549 = vmatprep.subr.bf16.mxu0 0
  %550 = vmatpush1.bf16.msra.mxu0 0
  %551 = vmatprep.subr.bf16.mxu0 0
  %552 = vmatpush1.bf16.msra.mxu0 0
  %553 = vmatprep.subr.bf16.mxu0 0
  %554 = vmatpush1.bf16.msra.mxu0 0
  %555 = vmatprep.subr.bf16.mxu0 0
  %556 = vmatpush1.bf16.msra.mxu0 0
  %557 = vmatprep.subr.bf16.mxu0 0
  %558 = vmatpush1.bf16.msra.mxu0 0
  %559 = vmatprep.subr.bf16.mxu0 0
  %560 = vmatpush1.bf16.msra.mxu0 0
  %561 = vmatprep.subr.bf16.mxu0 0
  %562 = vmatpush1.bf16.msra.mxu0 0
  %563 = vmatprep.subr.bf16.mxu0 0
  %564 = vmatpush1.bf16.msra.mxu0 0
  %565 = vmatprep.subr.bf16.mxu0 0
  %566 = vmatpush1.bf16.msra.mxu0 0
  %567 = vmatprep.subr.bf16.mxu0 0
  %568 = vmatpush1.bf16.msra.mxu0 0
  %569 = vmatprep.subr.bf16.mxu0 0
  %570 = vmatpush1.bf16.msra.mxu0 0
  %571 = vmatprep.subr.bf16.mxu0 0
  %572 = vmatpush1.bf16.msra.mxu0 0
  %573 = vmatprep.mubr.bf16.mxu0 0
  %574 = vmatmul.mubr.bf16.gmra.mrb[0].mxu0 %v427
  %v575 = vpop.f32.mrb[0].mxu0
  %v576 = vadd.f32 0.0, %v575
  %v577 = vpop.f32.mrb[0].mxu0
  %v578 = vpop.f32.mrb[0].mxu0
  %v579 = vpop.f32.mrb[0].mxu0
  %580 = vdwg.mxu0
  %v581 = vadd.f32 %v138, %v576
  %v582 = vadd.f32 %v581, %v536
  %v583 = vxor.u32 %v582, 2147483648
  %v584 = vmul.f32 %v583, 1.442695
  %v585 = vpow.pop %v584
  %v586 = vadd.f32 %v585, 1.0
  %v587 = vrcp.pop %v586
  %v588 = vmul.f32 1.0, %v587
  %v589 = vtanh.pop %v582
  %v590 = vmul.f32 %v588, %v415
  %592 = vrot.lane.b32.xlu0 %v589, 64
  %v593 = vpop.permute.xlu0 %592
  %v595 = vmul.f32 %v588, %v593
  %597 = vrot.lane.b32.xlu0 %v595, 32
  %v598 = vpop.permute.xlu0 %597
  %v600 = vadd.f32 %v590, %v598
  %v601 = vtanh.pop %v600
  %603 = vrot.lane.b32.xlu0 %v601, 64
  %v604 = vpop.permute.xlu0 %603
  %v606 = vmul.f32 %v588, %v604
  %v607 = vpack.c.bf16 %v493, %v493
  %609 = vrot.lane.b32.xlu0 %v607, 32
  %v610 = vpop.permute.xlu0 %609
  %v612 = vsel %vm151, %v610, 0
  %614 = vmatprep.subr.bf16.mxu0 0
  %615 = vmatpush1.bf16.msra.mxu0 %v147
  %616 = vmatprep.subr.bf16.mxu0 0
  %617 = vmatpush1.bf16.msra.mxu0 %v148
  %618 = vmatprep.subr.bf16.mxu0 0
  %619 = vmatpush1.bf16.msra.mxu0 0
  %620 = vmatprep.subr.bf16.mxu0 0
  %621 = vmatpush1.bf16.msra.mxu0 0
  %622 = vmatprep.subr.bf16.mxu0 0
  %623 = vmatpush1.bf16.msra.mxu0 0
  %624 = vmatprep.subr.bf16.mxu0 0
  %625 = vmatpush1.bf16.msra.mxu0 0
  %626 = vmatprep.subr.bf16.mxu0 0
  %627 = vmatpush1.bf16.msra.mxu0 0
  %628 = vmatprep.subr.bf16.mxu0 0
  %629 = vmatpush1.bf16.msra.mxu0 0
  %630 = vmatprep.subr.bf16.mxu0 0
  %631 = vmatpush1.bf16.msra.mxu0 0
  %632 = vmatprep.subr.bf16.mxu0 0
  %633 = vmatpush1.bf16.msra.mxu0 0
  %634 = vmatprep.subr.bf16.mxu0 0
  %635 = vmatpush1.bf16.msra.mxu0 0
  %636 = vmatprep.subr.bf16.mxu0 0
  %637 = vmatpush1.bf16.msra.mxu0 0
  %638 = vmatprep.subr.bf16.mxu0 0
  %639 = vmatpush1.bf16.msra.mxu0 0
  %640 = vmatprep.subr.bf16.mxu0 0
  %641 = vmatpush1.bf16.msra.mxu0 0
  %642 = vmatprep.subr.bf16.mxu0 0
  %643 = vmatpush1.bf16.msra.mxu0 0
  %644 = vmatprep.subr.bf16.mxu0 0
  %645 = vmatpush1.bf16.msra.mxu0 0
  %646 = vmatprep.mubr.bf16.mxu0 0
  %647 = vmatmul.mubr.bf16.gmra.mrb[0].mxu0 %v612
  %v648 = vpop.f32.mrb[0].mxu0
  %v649 = vadd.f32 0.0, %v648
  %v650 = vpop.f32.mrb[0].mxu0
  %v651 = vpop.f32.mrb[0].mxu0
  %v652 = vpop.f32.mrb[0].mxu0
  %653 = vdwg.mxu0
  %v654 = vadd.f32 %v115, %v649
  %v655 = vxor.u32 %v654, 2147483648
  %v656 = vmul.f32 %v655, 1.442695
  %v657 = vpow.pop %v656
  %v658 = vadd.f32 %v657, 1.0
  %v659 = vrcp.pop %v658
  %v660 = vmul.f32 1.0, %v659
  %v661 = vtanh.pop %v654
  %v662 = vmul.f32 %v660, %v487
  %664 = vrot.lane.b32.xlu0 %v661, 64
  %v665 = vpop.permute.xlu0 %664
  %v667 = vmul.f32 %v660, %v665
  %669 = vrot.lane.b32.xlu0 %v667, 32
  %v670 = vpop.permute.xlu0 %669
  %v672 = vadd.f32 %v662, %v670
  %v673 = vtanh.pop %v672
  %675 = vrot.lane.b32.xlu0 %v673, 64
  %v676 = vpop.permute.xlu0 %675
  %v678 = vmul.f32 %v660, %v676
  %v679 = vpack.c.bf16 %v606, %v606
  %681 = vrot.lane.b32.xlu0 %v679, 32
  %v682 = vpop.permute.xlu0 %681
  %v684 = vsel %vm151, %v682, 0
  %686 = vmatprep.subr.bf16.mxu0 0
  %687 = vmatpush1.bf16.msra.mxu0 %v300
  %688 = vmatprep.subr.bf16.mxu0 0
  %689 = vmatpush1.bf16.msra.mxu0 %v301
  %690 = vmatprep.subr.bf16.mxu0 0
  %691 = vmatpush1.bf16.msra.mxu0 0
  %692 = vmatprep.subr.bf16.mxu0 0
  %693 = vmatpush1.bf16.msra.mxu0 0
  %694 = vmatprep.subr.bf16.mxu0 0
  %695 = vmatpush1.bf16.msra.mxu0 0
  %696 = vmatprep.subr.bf16.mxu0 0
  %697 = vmatpush1.bf16.msra.mxu0 0
  %698 = vmatprep.subr.bf16.mxu0 0
  %699 = vmatpush1.bf16.msra.mxu0 0
  %700 = vmatprep.subr.bf16.mxu0 0
  %701 = vmatpush1.bf16.msra.mxu0 0
  %702 = vmatprep.subr.bf16.mxu0 0
  %703 = vmatpush1.bf16.msra.mxu0 0
  %704 = vmatprep.subr.bf16.mxu0 0
  %705 = vmatpush1.bf16.msra.mxu0 0
  %706 = vmatprep.subr.bf16.mxu0 0
  %707 = vmatpush1.bf16.msra.mxu0 0
  %708 = vmatprep.subr.bf16.mxu0 0
  %709 = vmatpush1.bf16.msra.mxu0 0
  %710 = vmatprep.subr.bf16.mxu0 0
  %711 = vmatpush1.bf16.msra.mxu0 0
  %712 = vmatprep.subr.bf16.mxu0 0
  %713 = vmatpush1.bf16.msra.mxu0 0
  %714 = vmatprep.subr.bf16.mxu0 0
  %715 = vmatpush1.bf16.msra.mxu0 0
  %716 = vmatprep.subr.bf16.mxu0 0
  %717 = vmatpush1.bf16.msra.mxu0 0
  %718 = vmatprep.mubr.bf16.mxu0 0
  %719 = vmatmul.mubr.bf16.gmra.mrb[0].mxu0 %v684
  %v720 = vpop.f32.mrb[0].mxu0
  %v721 = vadd.f32 0.0, %v720
  %v722 = vpop.f32.mrb[0].mxu0
  %v723 = vpop.f32.mrb[0].mxu0
  %v724 = vpop.f32.mrb[0].mxu0
  %725 = vdwg.mxu0
  %726 = vmatprep.subr.bf16.mxu0 0
  %727 = vmatpush1.bf16.msra.mxu0 %v352
  %728 = vmatprep.subr.bf16.mxu0 0
  %729 = vmatpush1.bf16.msra.mxu0 %v353
  %730 = vmatprep.subr.bf16.mxu0 0
  %731 = vmatpush1.bf16.msra.mxu0 0
  %732 = vmatprep.subr.bf16.mxu0 0
  %733 = vmatpush1.bf16.msra.mxu0 0
  %734 = vmatprep.subr.bf16.mxu0 0
  %735 = vmatpush1.bf16.msra.mxu0 0
  %736 = vmatprep.subr.bf16.mxu0 0
  %737 = vmatpush1.bf16.msra.mxu0 0
  %738 = vmatprep.subr.bf16.mxu0 0
  %739 = vmatpush1.bf16.msra.mxu0 0
  %740 = vmatprep.subr.bf16.mxu0 0
  %741 = vmatpush1.bf16.msra.mxu0 0
  %742 = vmatprep.subr.bf16.mxu0 0
  %743 = vmatpush1.bf16.msra.mxu0 0
  %744 = vmatprep.subr.bf16.mxu0 0
  %745 = vmatpush1.bf16.msra.mxu0 0
  %746 = vmatprep.subr.bf16.mxu0 0
  %747 = vmatpush1.bf16.msra.mxu0 0
  %748 = vmatprep.subr.bf16.mxu0 0
  %749 = vmatpush1.bf16.msra.mxu0 0
  %750 = vmatprep.subr.bf16.mxu0 0
  %751 = vmatpush1.bf16.msra.mxu0 0
  %752 = vmatprep.subr.bf16.mxu0 0
  %753 = vmatpush1.bf16.msra.mxu0 0
  %754 = vmatprep.subr.bf16.mxu0 0
  %755 = vmatpush1.bf16.msra.mxu0 0
  %756 = vmatprep.subr.bf16.mxu0 0
  %757 = vmatpush1.bf16.msra.mxu0 0
  %758 = vmatprep.mubr.bf16.mxu0 0
  %759 = vmatmul.mubr.bf16.gmra.mrb[0].mxu0 %v612
  %v760 = vpop.f32.mrb[0].mxu0
  %v761 = vadd.f32 0.0, %v760
  %v762 = vpop.f32.mrb[0].mxu0
  %v763 = vpop.f32.mrb[0].mxu0
  %v764 = vpop.f32.mrb[0].mxu0
  %765 = vdwg.mxu0
  %v766 = vadd.f32 %v138, %v761
  %v767 = vadd.f32 %v766, %v721
  %v768 = vxor.u32 %v767, 2147483648
  %v769 = vmul.f32 %v768, 1.442695
  %v770 = vpow.pop %v769
  %v771 = vadd.f32 %v770, 1.0
  %v772 = vrcp.pop %v771
  %v773 = vmul.f32 1.0, %v772
  %v774 = vtanh.pop %v767
  %v775 = vmul.f32 %v773, %v600
  %777 = vrot.lane.b32.xlu0 %v774, 64
  %v778 = vpop.permute.xlu0 %777
  %v780 = vmul.f32 %v773, %v778
  %782 = vrot.lane.b32.xlu0 %v780, 32
  %v783 = vpop.permute.xlu0 %782
  %v785 = vadd.f32 %v775, %v783
  %v786 = vtanh.pop %v785
  %788 = vrot.lane.b32.xlu0 %v786, 64
  %v789 = vpop.permute.xlu0 %788
  %v791 = vmul.f32 %v773, %v789
  %v792 = vpack.c.bf16 %v678, %v678
  %794 = vrot.lane.b32.xlu0 %v792, 32
  %v795 = vpop.permute.xlu0 %794
  %v797 = vsel %vm151, %v795, 0
  %799 = vmatprep.subr.bf16.mxu0 0
  %800 = vmatpush1.bf16.msra.mxu0 %v147
  %801 = vmatprep.subr.bf16.mxu0 0
  %802 = vmatpush1.bf16.msra.mxu0 %v148
  %803 = vmatprep.subr.bf16.mxu0 0
  %804 = vmatpush1.bf16.msra.mxu0 0
  %805 = vmatprep.subr.bf16.mxu0 0
  %806 = vmatpush1.bf16.msra.mxu0 0
  %807 = vmatprep.subr.bf16.mxu0 0
  %808 = vmatpush1.bf16.msra.mxu0 0
  %809 = vmatprep.subr.bf16.mxu0 0
  %810 = vmatpush1.bf16.msra.mxu0 0
  %811 = vmatprep.subr.bf16.mxu0 0
  %812 = vmatpush1.bf16.msra.mxu0 0
  %813 = vmatprep.subr.bf16.mxu0 0
  %814 = vmatpush1.bf16.msra.mxu0 0
  %815 = vmatprep.subr.bf16.mxu0 0
  %816 = vmatpush1.bf16.msra.mxu0 0
  %817 = vmatprep.subr.bf16.mxu0 0
  %818 = vmatpush1.bf16.msra.mxu0 0
  %819 = vmatprep.subr.bf16.mxu0 0
  %820 = vmatpush1.bf16.msra.mxu0 0
  %821 = vmatprep.subr.bf16.mxu0 0
  %822 = vmatpush1.bf16.msra.mxu0 0
  %823 = vmatprep.subr.bf16.mxu0 0
  %824 = vmatpush1.bf16.msra.mxu0 0
  %825 = vmatprep.subr.bf16.mxu0 0
  %826 = vmatpush1.bf16.msra.mxu0 0
  %827 = vmatprep.subr.bf16.mxu0 0
  %828 = vmatpush1.bf16.msra.mxu0 0
  %829 = vmatprep.subr.bf16.mxu0 0
  %830 = vmatpush1.bf16.msra.mxu0 0
  %831 = vmatprep.mubr.bf16.mxu0 0
  %832 = vmatmul.mubr.bf16.gmra.mrb[0].mxu0 %v797
  %v833 = vpop.f32.mrb[0].mxu0
  %v834 = vadd.f32 0.0, %v833
  %v835 = vpop.f32.mrb[0].mxu0
  %v836 = vpop.f32.mrb[0].mxu0
  %v837 = vpop.f32.mrb[0].mxu0
  %838 = vdwg.mxu0
  %v839 = vadd.f32 %v120, %v834
  %v840 = vxor.u32 %v839, 2147483648
  %v841 = vmul.f32 %v840, 1.442695
  %v842 = vpow.pop %v841
  %v843 = vadd.f32 %v842, 1.0
  %v844 = vrcp.pop %v843
  %v845 = vmul.f32 1.0, %v844
  %v846 = vtanh.pop %v839
  %v847 = vmul.f32 %v845, %v672
  %849 = vrot.lane.b32.xlu0 %v846, 64
  %v850 = vpop.permute.xlu0 %849
  %v852 = vmul.f32 %v845, %v850
  %854 = vrot.lane.b32.xlu0 %v852, 32
  %v855 = vpop.permute.xlu0 %854
  %v857 = vadd.f32 %v847, %v855
  %v858 = vtanh.pop %v857
  %860 = vrot.lane.b32.xlu0 %v858, 64
  %v861 = vpop.permute.xlu0 %860
  %v863 = vmul.f32 %v845, %v861
  %v864 = vpack.c.bf16 %v791, %v791
  %866 = vrot.lane.b32.xlu0 %v864, 32
  %v867 = vpop.permute.xlu0 %866
  %v869 = vsel %vm151, %v867, 0
  %871 = vmatprep.subr.bf16.mxu0 0
  %872 = vmatpush1.bf16.msra.mxu0 %v300
  %873 = vmatprep.subr.bf16.mxu0 0
  %874 = vmatpush1.bf16.msra.mxu0 %v301
  %875 = vmatprep.subr.bf16.mxu0 0
  %876 = vmatpush1.bf16.msra.mxu0 0
  %877 = vmatprep.subr.bf16.mxu0 0
  %878 = vmatpush1.bf16.msra.mxu0 0
  %879 = vmatprep.subr.bf16.mxu0 0
  %880 = vmatpush1.bf16.msra.mxu0 0
  %881 = vmatprep.subr.bf16.mxu0 0
  %882 = vmatpush1.bf16.msra.mxu0 0
  %883 = vmatprep.subr.bf16.mxu0 0
  %884 = vmatpush1.bf16.msra.mxu0 0
  %885 = vmatprep.subr.bf16.mxu0 0
  %886 = vmatpush1.bf16.msra.mxu0 0
  %887 = vmatprep.subr.bf16.mxu0 0
  %888 = vmatpush1.bf16.msra.mxu0 0
  %889 = vmatprep.subr.bf16.mxu0 0
  %890 = vmatpush1.bf16.msra.mxu0 0
  %891 = vmatprep.subr.bf16.mxu0 0
  %892 = vmatpush1.bf16.msra.mxu0 0
  %893 = vmatprep.subr.bf16.mxu0 0
  %894 = vmatpush1.bf16.msra.mxu0 0
  %895 = vmatprep.subr.bf16.mxu0 0
  %896 = vmatpush1.bf16.msra.mxu0 0
  %897 = vmatprep.subr.bf16.mxu0 0
  %898 = vmatpush1.bf16.msra.mxu0 0
  %899 = vmatprep.subr.bf16.mxu0 0
  %900 = vmatpush1.bf16.msra.mxu0 0
  %901 = vmatprep.subr.bf16.mxu0 0
  %902 = vmatpush1.bf16.msra.mxu0 0
  %903 = vmatprep.mubr.bf16.mxu0 0
  %904 = vmatmul.mubr.bf16.gmra.mrb[0].mxu0 %v869
  %v905 = vpop.f32.mrb[0].mxu0
  %v906 = vadd.f32 0.0, %v905
  %v907 = vpop.f32.mrb[0].mxu0
  %v908 = vpop.f32.mrb[0].mxu0
  %v909 = vpop.f32.mrb[0].mxu0
  %910 = vdwg.mxu0
  %911 = vmatprep.subr.bf16.mxu0 0
  %912 = vmatpush1.bf16.msra.mxu0 %v352
  %913 = vmatprep.subr.bf16.mxu0 0
  %914 = vmatpush1.bf16.msra.mxu0 %v353
  %915 = vmatprep.subr.bf16.mxu0 0
  %916 = vmatpush1.bf16.msra.mxu0 0
  %917 = vmatprep.subr.bf16.mxu0 0
  %918 = vmatpush1.bf16.msra.mxu0 0
  %919 = vmatprep.subr.bf16.mxu0 0
  %920 = vmatpush1.bf16.msra.mxu0 0
  %921 = vmatprep.subr.bf16.mxu0 0
  %922 = vmatpush1.bf16.msra.mxu0 0
  %923 = vmatprep.subr.bf16.mxu0 0
  %924 = vmatpush1.bf16.msra.mxu0 0
  %925 = vmatprep.subr.bf16.mxu0 0
  %926 = vmatpush1.bf16.msra.mxu0 0
  %927 = vmatprep.subr.bf16.mxu0 0
  %928 = vmatpush1.bf16.msra.mxu0 0
  %929 = vmatprep.subr.bf16.mxu0 0
  %930 = vmatpush1.bf16.msra.mxu0 0
  %931 = vmatprep.subr.bf16.mxu0 0
  %932 = vmatpush1.bf16.msra.mxu0 0
  %933 = vmatprep.subr.bf16.mxu0 0
  %934 = vmatpush1.bf16.msra.mxu0 0
  %935 = vmatprep.subr.bf16.mxu0 0
  %936 = vmatpush1.bf16.msra.mxu0 0
  %937 = vmatprep.subr.bf16.mxu0 0
  %938 = vmatpush1.bf16.msra.mxu0 0
  %939 = vmatprep.subr.bf16.mxu0 0
  %940 = vmatpush1.bf16.msra.mxu0 0
  %941 = vmatprep.subr.bf16.mxu0 0
  %942 = vmatpush1.bf16.msra.mxu0 0
  %943 = vmatprep.mubr.bf16.mxu0 0
  %944 = vmatmul.mubr.bf16.gmra.mrb[0].mxu0 %v797
  %v945 = vpop.f32.mrb[0].mxu0
  %v946 = vadd.f32 0.0, %v945
  %v947 = vpop.f32.mrb[0].mxu0
  %v948 = vpop.f32.mrb[0].mxu0
  %v949 = vpop.f32.mrb[0].mxu0
  %950 = vdwg.mxu0
  %v951 = vadd.f32 %v138, %v946
  %v952 = vadd.f32 %v951, %v906
  %v953 = vxor.u32 %v952, 2147483648
  %v954 = vmul.f32 %v953, 1.442695
  %v955 = vpow.pop %v954
  %v956 = vadd.f32 %v955, 1.0
  %v957 = vrcp.pop %v956
  %v958 = vmul.f32 1.0, %v957
  %v959 = vtanh.pop %v952
  %v960 = vmul.f32 %v958, %v785
  %962 = vrot.lane.b32.xlu0 %v959, 64
  %v963 = vpop.permute.xlu0 %962
  %v965 = vmul.f32 %v958, %v963
  %967 = vrot.lane.b32.xlu0 %v965, 32
  %v968 = vpop.permute.xlu0 %967
  %v970 = vadd.f32 %v960, %v968
  %v971 = vtanh.pop %v970
  %973 = vrot.lane.b32.xlu0 %v971, 64
  %v974 = vpop.permute.xlu0 %973
  %v976 = vmul.f32 %v958, %v974
  %v977 = vpack.c.bf16 %v863, %v863
  %979 = vrot.lane.b32.xlu0 %v977, 32
  %v980 = vpop.permute.xlu0 %979
  %v982 = vsel %vm151, %v980, 0
  %984 = vmatprep.subr.bf16.mxu0 0
  %985 = vmatpush1.bf16.msra.mxu0 %v147
  %986 = vmatprep.subr.bf16.mxu0 0
  %987 = vmatpush1.bf16.msra.mxu0 %v148
  %988 = vmatprep.subr.bf16.mxu0 0
  %989 = vmatpush1.bf16.msra.mxu0 0
  %990 = vmatprep.subr.bf16.mxu0 0
  %991 = vmatpush1.bf16.msra.mxu0 0
  %992 = vmatprep.subr.bf16.mxu0 0
  %993 = vmatpush1.bf16.msra.mxu0 0
  %994 = vmatprep.subr.bf16.mxu0 0
  %995 = vmatpush1.bf16.msra.mxu0 0
  %996 = vmatprep.subr.bf16.mxu0 0
  %997 = vmatpush1.bf16.msra.mxu0 0
  %998 = vmatprep.subr.bf16.mxu0 0
  %999 = vmatpush1.bf16.msra.mxu0 0
  %1000 = vmatprep.subr.bf16.mxu0 0
  %1001 = vmatpush1.bf16.msra.mxu0 0
  %1002 = vmatprep.subr.bf16.mxu0 0
  %1003 = vmatpush1.bf16.msra.mxu0 0
  %1004 = vmatprep.subr.bf16.mxu0 0
  %1005 = vmatpush1.bf16.msra.mxu0 0
  %1006 = vmatprep.subr.bf16.mxu0 0
  %1007 = vmatpush1.bf16.msra.mxu0 0
  %1008 = vmatprep.subr.bf16.mxu0 0
  %1009 = vmatpush1.bf16.msra.mxu0 0
  %1010 = vmatprep.subr.bf16.mxu0 0
  %1011 = vmatpush1.bf16.msra.mxu0 0
  %1012 = vmatprep.subr.bf16.mxu0 0
  %1013 = vmatpush1.bf16.msra.mxu0 0
  %1014 = vmatprep.subr.bf16.mxu0 0
  %1015 = vmatpush1.bf16.msra.mxu0 0
  %1016 = vmatprep.mubr.bf16.mxu0 0
  %1017 = vmatmul.mubr.bf16.gmra.mrb[0].mxu0 %v982
  %v1018 = vpop.f32.mrb[0].mxu0
  %v1019 = vadd.f32 0.0, %v1018
  %v1020 = vpop.f32.mrb[0].mxu0
  %v1021 = vpop.f32.mrb[0].mxu0
  %v1022 = vpop.f32.mrb[0].mxu0
  %1023 = vdwg.mxu0
  %v1024 = vadd.f32 %v123, %v1019
  %v1025 = vxor.u32 %v1024, 2147483648
  %v1026 = vmul.f32 %v1025, 1.442695
  %v1027 = vpow.pop %v1026
  %v1028 = vadd.f32 %v1027, 1.0
  %v1029 = vrcp.pop %v1028
  %v1030 = vmul.f32 1.0, %v1029
  %v1031 = vtanh.pop %v1024
  %v1032 = vmul.f32 %v1030, %v857
  %1034 = vrot.lane.b32.xlu0 %v1031, 64
  %v1035 = vpop.permute.xlu0 %1034
  %v1037 = vmul.f32 %v1030, %v1035
  %1039 = vrot.lane.b32.xlu0 %v1037, 32
  %v1040 = vpop.permute.xlu0 %1039
  %v1042 = vadd.f32 %v1032, %v1040
  %v1043 = vtanh.pop %v1042
  %1045 = vrot.lane.b32.xlu0 %v1043, 64
  %v1046 = vpop.permute.xlu0 %1045
  %v1048 = vmul.f32 %v1030, %v1046
  %v1049 = vpack.c.bf16 %v976, %v976
  %1051 = vrot.lane.b32.xlu0 %v1049, 32
  %v1052 = vpop.permute.xlu0 %1051
  %v1054 = vsel %vm151, %v1052, 0
  %1056 = vmatprep.subr.bf16.mxu0 0
  %1057 = vmatpush1.bf16.msra.mxu0 %v300
  %1058 = vmatprep.subr.bf16.mxu0 0
  %1059 = vmatpush1.bf16.msra.mxu0 %v301
  %1060 = vmatprep.subr.bf16.mxu0 0
  %1061 = vmatpush1.bf16.msra.mxu0 0
  %1062 = vmatprep.subr.bf16.mxu0 0
  %1063 = vmatpush1.bf16.msra.mxu0 0
  %1064 = vmatprep.subr.bf16.mxu0 0
  %1065 = vmatpush1.bf16.msra.mxu0 0
  %1066 = vmatprep.subr.bf16.mxu0 0
  %1067 = vmatpush1.bf16.msra.mxu0 0
  %1068 = vmatprep.subr.bf16.mxu0 0
  %1069 = vmatpush1.bf16.msra.mxu0 0
  %1070 = vmatprep.subr.bf16.mxu0 0
  %1071 = vmatpush1.bf16.msra.mxu0 0
  %1072 = vmatprep.subr.bf16.mxu0 0
  %1073 = vmatpush1.bf16.msra.mxu0 0
  %1074 = vmatprep.subr.bf16.mxu0 0
  %1075 = vmatpush1.bf16.msra.mxu0 0
  %1076 = vmatprep.subr.bf16.mxu0 0
  %1077 = vmatpush1.bf16.msra.mxu0 0
  %1078 = vmatprep.subr.bf16.mxu0 0
  %1079 = vmatpush1.bf16.msra.mxu0 0
  %1080 = vmatprep.subr.bf16.mxu0 0
  %1081 = vmatpush1.bf16.msra.mxu0 0
  %1082 = vmatprep.subr.bf16.mxu0 0
  %1083 = vmatpush1.bf16.msra.mxu0 0
  %1084 = vmatprep.subr.bf16.mxu0 0
  %1085 = vmatpush1.bf16.msra.mxu0 0
  %1086 = vmatprep.subr.bf16.mxu0 0
  %1087 = vmatpush1.bf16.msra.mxu0 0
  %1088 = vmatprep.mubr.bf16.mxu0 0
  %1089 = vmatmul.mubr.bf16.gmra.mrb[0].mxu0 %v1054
  %v1090 = vpop.f32.mrb[0].mxu0
  %v1091 = vadd.f32 0.0, %v1090
  %v1092 = vpop.f32.mrb[0].mxu0
  %v1093 = vpop.f32.mrb[0].mxu0
  %v1094 = vpop.f32.mrb[0].mxu0
  %1095 = vdwg.mxu0
  %1096 = vmatprep.subr.bf16.mxu0 0
  %1097 = vmatpush1.bf16.msra.mxu0 %v352
  %1098 = vmatprep.subr.bf16.mxu0 0
  %1099 = vmatpush1.bf16.msra.mxu0 %v353
  %1100 = vmatprep.subr.bf16.mxu0 0
  %1101 = vmatpush1.bf16.msra.mxu0 0
  %1102 = vmatprep.subr.bf16.mxu0 0
  %1103 = vmatpush1.bf16.msra.mxu0 0
  %1104 = vmatprep.subr.bf16.mxu0 0
  %1105 = vmatpush1.bf16.msra.mxu0 0
  %1106 = vmatprep.subr.bf16.mxu0 0
  %1107 = vmatpush1.bf16.msra.mxu0 0
  %1108 = vmatprep.subr.bf16.mxu0 0
  %1109 = vmatpush1.bf16.msra.mxu0 0
  %1110 = vmatprep.subr.bf16.mxu0 0
  %1111 = vmatpush1.bf16.msra.mxu0 0
  %1112 = vmatprep.subr.bf16.mxu0 0
  %1113 = vmatpush1.bf16.msra.mxu0 0
  %1114 = vmatprep.subr.bf16.mxu0 0
  %1115 = vmatpush1.bf16.msra.mxu0 0
  %1116 = vmatprep.subr.bf16.mxu0 0
  %1117 = vmatpush1.bf16.msra.mxu0 0
  %1118 = vmatprep.subr.bf16.mxu0 0
  %1119 = vmatpush1.bf16.msra.mxu0 0
  %1120 = vmatprep.subr.bf16.mxu0 0
  %1121 = vmatpush1.bf16.msra.mxu0 0
  %1122 = vmatprep.subr.bf16.mxu0 0
  %1123 = vmatpush1.bf16.msra.mxu0 0
  %1124 = vmatprep.subr.bf16.mxu0 0
  %1125 = vmatpush1.bf16.msra.mxu0 0
  %1126 = vmatprep.subr.bf16.mxu0 0
  %1127 = vmatpush1.bf16.msra.mxu0 0
  %1128 = vmatprep.mubr.bf16.mxu0 0
  %1129 = vmatmul.mubr.bf16.gmra.mrb[0].mxu0 %v982
  %v1130 = vpop.f32.mrb[0].mxu0
  %v1131 = vadd.f32 0.0, %v1130
  %v1132 = vpop.f32.mrb[0].mxu0
  %v1133 = vpop.f32.mrb[0].mxu0
  %v1134 = vpop.f32.mrb[0].mxu0
  %1135 = vdwg.mxu0
  %v1136 = vadd.f32 %v138, %v1131
  %v1137 = vadd.f32 %v1136, %v1091
  %v1138 = vxor.u32 %v1137, 2147483648
  %v1139 = vmul.f32 %v1138, 1.442695
  %v1140 = vpow.pop %v1139
  %v1141 = vadd.f32 %v1140, 1.0
  %v1142 = vrcp.pop %v1141
  %v1143 = vmul.f32 1.0, %v1142
  %v1144 = vtanh.pop %v1137
  %v1145 = vmul.f32 %v1143, %v970
  %1147 = vrot.lane.b32.xlu0 %v1144, 64
  %v1148 = vpop.permute.xlu0 %1147
  %v1150 = vmul.f32 %v1143, %v1148
  %1152 = vrot.lane.b32.xlu0 %v1150, 32
  %v1153 = vpop.permute.xlu0 %1152
  %v1155 = vadd.f32 %v1145, %v1153
  %v1156 = vtanh.pop %v1155
  %1158 = vrot.lane.b32.xlu0 %v1156, 64
  %v1159 = vpop.permute.xlu0 %1158
  %v1161 = vmul.f32 %v1143, %v1159
  %v1162 = vpack.c.bf16 %v1048, %v1048
  %1164 = vrot.lane.b32.xlu0 %v1162, 32
  %v1165 = vpop.permute.xlu0 %1164
  %v1167 = vsel %vm151, %v1165, 0
  %1169 = vmatprep.subr.bf16.mxu0 0
  %1170 = vmatpush1.bf16.msra.mxu0 %v147
  %1171 = vmatprep.subr.bf16.mxu0 0
  %1172 = vmatpush1.bf16.msra.mxu0 %v148
  %1173 = vmatprep.subr.bf16.mxu0 0
  %1174 = vmatpush1.bf16.msra.mxu0 0
  %1175 = vmatprep.subr.bf16.mxu0 0
  %1176 = vmatpush1.bf16.msra.mxu0 0
  %1177 = vmatprep.subr.bf16.mxu0 0
  %1178 = vmatpush1.bf16.msra.mxu0 0
  %1179 = vmatprep.subr.bf16.mxu0 0
  %1180 = vmatpush1.bf16.msra.mxu0 0
  %1181 = vmatprep.subr.bf16.mxu0 0
  %1182 = vmatpush1.bf16.msra.mxu0 0
  %1183 = vmatprep.subr.bf16.mxu0 0
  %1184 = vmatpush1.bf16.msra.mxu0 0
  %1185 = vmatprep.subr.bf16.mxu0 0
  %1186 = vmatpush1.bf16.msra.mxu0 0
  %1187 = vmatprep.subr.bf16.mxu0 0
  %1188 = vmatpush1.bf16.msra.mxu0 0
  %1189 = vmatprep.subr.bf16.mxu0 0
  %1190 = vmatpush1.bf16.msra.mxu0 0
  %1191 = vmatprep.subr.bf16.mxu0 0
  %1192 = vmatpush1.bf16.msra.mxu0 0
  %1193 = vmatprep.subr.bf16.mxu0 0
  %1194 = vmatpush1.bf16.msra.mxu0 0
  %1195 = vmatprep.subr.bf16.mxu0 0
  %1196 = vmatpush1.bf16.msra.mxu0 0
  %1197 = vmatprep.subr.bf16.mxu0 0
  %1198 = vmatpush1.bf16.msra.mxu0 0
  %1199 = vmatprep.subr.bf16.mxu0 0
  %1200 = vmatpush1.bf16.msra.mxu0 0
  %1201 = vmatprep.mubr.bf16.mxu0 0
  %1202 = vmatmul.mubr.bf16.gmra.mrb[0].mxu0 %v1167
  %v1203 = vpop.f32.mrb[0].mxu0
  %v1204 = vadd.f32 0.0, %v1203
  %v1205 = vpop.f32.mrb[0].mxu0
  %v1206 = vpop.f32.mrb[0].mxu0
  %v1207 = vpop.f32.mrb[0].mxu0
  %1208 = vdwg.mxu0
  %v1209 = vadd.f32 %v128, %v1204
  %v1210 = vxor.u32 %v1209, 2147483648
  %v1211 = vmul.f32 %v1210, 1.442695
  %v1212 = vpow.pop %v1211
  %v1213 = vadd.f32 %v1212, 1.0
  %v1214 = vrcp.pop %v1213
  %v1215 = vmul.f32 1.0, %v1214
  %v1216 = vtanh.pop %v1209
  %v1217 = vmul.f32 %v1215, %v1042
  %1219 = vrot.lane.b32.xlu0 %v1216, 64
  %v1220 = vpop.permute.xlu0 %1219
  %v1222 = vmul.f32 %v1215, %v1220
  %1224 = vrot.lane.b32.xlu0 %v1222, 32
  %v1225 = vpop.permute.xlu0 %1224
  %v1227 = vadd.f32 %v1217, %v1225
  %v1228 = vtanh.pop %v1227
  %1230 = vrot.lane.b32.xlu0 %v1228, 64
  %v1231 = vpop.permute.xlu0 %1230
  %v1233 = vmul.f32 %v1215, %v1231
  %v1234 = vpack.c.bf16 %v1161, %v1161
  %1236 = vrot.lane.b32.xlu0 %v1234, 32
  %v1237 = vpop.permute.xlu0 %1236
  %v1239 = vsel %vm151, %v1237, 0
  %1241 = vmatprep.subr.bf16.mxu0 0
  %1242 = vmatpush1.bf16.msra.mxu0 %v300
  %1243 = vmatprep.subr.bf16.mxu0 0
  %1244 = vmatpush1.bf16.msra.mxu0 %v301
  %1245 = vmatprep.subr.bf16.mxu0 0
  %1246 = vmatpush1.bf16.msra.mxu0 0
  %1247 = vmatprep.subr.bf16.mxu0 0
  %1248 = vmatpush1.bf16.msra.mxu0 0
  %1249 = vmatprep.subr.bf16.mxu0 0
  %1250 = vmatpush1.bf16.msra.mxu0 0
  %1251 = vmatprep.subr.bf16.mxu0 0
  %1252 = vmatpush1.bf16.msra.mxu0 0
  %1253 = vmatprep.subr.bf16.mxu0 0
  %1254 = vmatpush1.bf16.msra.mxu0 0
  %1255 = vmatprep.subr.bf16.mxu0 0
  %1256 = vmatpush1.bf16.msra.mxu0 0
  %1257 = vmatprep.subr.bf16.mxu0 0
  %1258 = vmatpush1.bf16.msra.mxu0 0
  %1259 = vmatprep.subr.bf16.mxu0 0
  %1260 = vmatpush1.bf16.msra.mxu0 0
  %1261 = vmatprep.subr.bf16.mxu0 0
  %1262 = vmatpush1.bf16.msra.mxu0 0
  %1263 = vmatprep.subr.bf16.mxu0 0
  %1264 = vmatpush1.bf16.msra.mxu0 0
  %1265 = vmatprep.subr.bf16.mxu0 0
  %1266 = vmatpush1.bf16.msra.mxu0 0
  %1267 = vmatprep.subr.bf16.mxu0 0
  %1268 = vmatpush1.bf16.msra.mxu0 0
  %1269 = vmatprep.subr.bf16.mxu0 0
  %1270 = vmatpush1.bf16.msra.mxu0 0
  %1271 = vmatprep.subr.bf16.mxu0 0
  %1272 = vmatpush1.bf16.msra.mxu0 0
  %1273 = vmatprep.mubr.bf16.mxu0 0
  %1274 = vmatmul.mubr.bf16.gmra.mrb[0].mxu0 %v1239
  %v1275 = vpop.f32.mrb[0].mxu0
  %v1276 = vadd.f32 0.0, %v1275
  %v1277 = vpop.f32.mrb[0].mxu0
  %v1278 = vpop.f32.mrb[0].mxu0
  %v1279 = vpop.f32.mrb[0].mxu0
  %1280 = vdwg.mxu0
  %1281 = vmatprep.subr.bf16.mxu0 0
  %1282 = vmatpush1.bf16.msra.mxu0 %v352
  %1283 = vmatprep.subr.bf16.mxu0 0
  %1284 = vmatpush1.bf16.msra.mxu0 %v353
  %1285 = vmatprep.subr.bf16.mxu0 0
  %1286 = vmatpush1.bf16.msra.mxu0 0
  %1287 = vmatprep.subr.bf16.mxu0 0
  %1288 = vmatpush1.bf16.msra.mxu0 0
  %1289 = vmatprep.subr.bf16.mxu0 0
  %1290 = vmatpush1.bf16.msra.mxu0 0
  %1291 = vmatprep.subr.bf16.mxu0 0
  %1292 = vmatpush1.bf16.msra.mxu0 0
  %1293 = vmatprep.subr.bf16.mxu0 0
  %1294 = vmatpush1.bf16.msra.mxu0 0
  %1295 = vmatprep.subr.bf16.mxu0 0
  %1296 = vmatpush1.bf16.msra.mxu0 0
  %1297 = vmatprep.subr.bf16.mxu0 0
  %1298 = vmatpush1.bf16.msra.mxu0 0
  %1299 = vmatprep.subr.bf16.mxu0 0
  %1300 = vmatpush1.bf16.msra.mxu0 0
  %1301 = vmatprep.subr.bf16.mxu0 0
  %1302 = vmatpush1.bf16.msra.mxu0 0
  %1303 = vmatprep.subr.bf16.mxu0 0
  %1304 = vmatpush1.bf16.msra.mxu0 0
  %1305 = vmatprep.subr.bf16.mxu0 0
  %1306 = vmatpush1.bf16.msra.mxu0 0
  %1307 = vmatprep.subr.bf16.mxu0 0
  %1308 = vmatpush1.bf16.msra.mxu0 0
  %1309 = vmatprep.subr.bf16.mxu0 0
  %1310 = vmatpush1.bf16.msra.mxu0 0
  %1311 = vmatprep.subr.bf16.mxu0 0
  %1312 = vmatpush1.bf16.msra.mxu0 0
  %1313 = vmatprep.mubr.bf16.mxu0 0
  %1314 = vmatmul.mubr.bf16.gmra.mrb[0].mxu0 %v1167
  %v1315 = vpop.f32.mrb[0].mxu0
  %v1316 = vadd.f32 0.0, %v1315
  %v1317 = vpop.f32.mrb[0].mxu0
  %v1318 = vpop.f32.mrb[0].mxu0
  %v1319 = vpop.f32.mrb[0].mxu0
  %1320 = vdwg.mxu0
  %v1321 = vadd.f32 %v138, %v1316
  %v1322 = vadd.f32 %v1321, %v1276
  %v1323 = vxor.u32 %v1322, 2147483648
  %v1324 = vmul.f32 %v1323, 1.442695
  %v1325 = vpow.pop %v1324
  %v1326 = vadd.f32 %v1325, 1.0
  %v1327 = vrcp.pop %v1326
  %v1328 = vmul.f32 1.0, %v1327
  %v1329 = vtanh.pop %v1322
  %v1330 = vmul.f32 %v1328, %v1155
  %1332 = vrot.lane.b32.xlu0 %v1329, 64
  %v1333 = vpop.permute.xlu0 %1332
  %v1335 = vmul.f32 %v1328, %v1333
  %1337 = vrot.lane.b32.xlu0 %v1335, 32
  %v1338 = vpop.permute.xlu0 %1337
  %v1340 = vadd.f32 %v1330, %v1338
  %v1341 = vtanh.pop %v1340
  %1343 = vrot.lane.b32.xlu0 %v1341, 64
  %v1344 = vpop.permute.xlu0 %1343
  %v1346 = vmul.f32 %v1328, %v1344
  %v1347 = vpack.c.bf16 %v1233, %v1233
  %1349 = vrot.lane.b32.xlu0 %v1347, 32
  %v1350 = vpop.permute.xlu0 %1349
  %v1352 = vsel %vm151, %v1350, 0
  %1354 = vmatprep.subr.bf16.mxu0 0
  %1355 = vmatpush1.bf16.msra.mxu0 %v147
  %1356 = vmatprep.subr.bf16.mxu0 0
  %1357 = vmatpush1.bf16.msra.mxu0 %v148
  %1358 = vmatprep.subr.bf16.mxu0 0
  %1359 = vmatpush1.bf16.msra.mxu0 0
  %1360 = vmatprep.subr.bf16.mxu0 0
  %1361 = vmatpush1.bf16.msra.mxu0 0
  %1362 = vmatprep.subr.bf16.mxu0 0
  %1363 = vmatpush1.bf16.msra.mxu0 0
  %1364 = vmatprep.subr.bf16.mxu0 0
  %1365 = vmatpush1.bf16.msra.mxu0 0
  %1366 = vmatprep.subr.bf16.mxu0 0
  %1367 = vmatpush1.bf16.msra.mxu0 0
  %1368 = vmatprep.subr.bf16.mxu0 0
  %1369 = vmatpush1.bf16.msra.mxu0 0
  %1370 = vmatprep.subr.bf16.mxu0 0
  %1371 = vmatpush1.bf16.msra.mxu0 0
  %1372 = vmatprep.subr.bf16.mxu0 0
  %1373 = vmatpush1.bf16.msra.mxu0 0
  %1374 = vmatprep.subr.bf16.mxu0 0
  %1375 = vmatpush1.bf16.msra.mxu0 0
  %1376 = vmatprep.subr.bf16.mxu0 0
  %1377 = vmatpush1.bf16.msra.mxu0 0
  %1378 = vmatprep.subr.bf16.mxu0 0
  %1379 = vmatpush1.bf16.msra.mxu0 0
  %1380 = vmatprep.subr.bf16.mxu0 0
  %1381 = vmatpush1.bf16.msra.mxu0 0
  %1382 = vmatprep.subr.bf16.mxu0 0
  %1383 = vmatpush1.bf16.msra.mxu0 0
  %1384 = vmatprep.subr.bf16.mxu0 0
  %1385 = vmatpush1.bf16.msra.mxu0 0
  %1386 = vmatprep.mubr.bf16.mxu0 0
  %1387 = vmatmul.mubr.bf16.gmra.mrb[0].mxu0 %v1352
  %v1388 = vpop.f32.mrb[0].mxu0
  %v1389 = vadd.f32 0.0, %v1388
  %v1390 = vpop.f32.mrb[0].mxu0
  %v1391 = vpop.f32.mrb[0].mxu0
  %v1392 = vpop.f32.mrb[0].mxu0
  %1393 = vdwg.mxu0
  %v1394 = vadd.f32 %v131, %v1389
  %v1395 = vxor.u32 %v1394, 2147483648
  %v1396 = vmul.f32 %v1395, 1.442695
  %v1397 = vpow.pop %v1396
  %v1398 = vadd.f32 %v1397, 1.0
  %v1399 = vrcp.pop %v1398
  %v1400 = vmul.f32 1.0, %v1399
  %v1401 = vtanh.pop %v1394
  %v1402 = vmul.f32 %v1400, %v1227
  %1404 = vrot.lane.b32.xlu0 %v1401, 64
  %v1405 = vpop.permute.xlu0 %1404
  %v1407 = vmul.f32 %v1400, %v1405
  %1409 = vrot.lane.b32.xlu0 %v1407, 32
  %v1410 = vpop.permute.xlu0 %1409
  %v1412 = vadd.f32 %v1402, %v1410
  %v1413 = vtanh.pop %v1412
  %1415 = vrot.lane.b32.xlu0 %v1413, 64
  %v1416 = vpop.permute.xlu0 %1415
  %v1418 = vmul.f32 %v1400, %v1416
  %v1419 = vpack.c.bf16 %v1346, %v1346
  %1421 = vrot.lane.b32.xlu0 %v1419, 32
  %v1422 = vpop.permute.xlu0 %1421
  %v1424 = vsel %vm151, %v1422, 0
  %1426 = vmatprep.subr.bf16.mxu0 0
  %1427 = vmatpush1.bf16.msra.mxu0 %v300
  %1428 = vmatprep.subr.bf16.mxu0 0
  %1429 = vmatpush1.bf16.msra.mxu0 %v301
  %1430 = vmatprep.subr.bf16.mxu0 0
  %1431 = vmatpush1.bf16.msra.mxu0 0
  %1432 = vmatprep.subr.bf16.mxu0 0
  %1433 = vmatpush1.bf16.msra.mxu0 0
  %1434 = vmatprep.subr.bf16.mxu0 0
  %1435 = vmatpush1.bf16.msra.mxu0 0
  %1436 = vmatprep.subr.bf16.mxu0 0
  %1437 = vmatpush1.bf16.msra.mxu0 0
  %1438 = vmatprep.subr.bf16.mxu0 0
  %1439 = vmatpush1.bf16.msra.mxu0 0
  %1440 = vmatprep.subr.bf16.mxu0 0
  %1441 = vmatpush1.bf16.msra.mxu0 0
  %1442 = vmatprep.subr.bf16.mxu0 0
  %1443 = vmatpush1.bf16.msra.mxu0 0
  %1444 = vmatprep.subr.bf16.mxu0 0
  %1445 = vmatpush1.bf16.msra.mxu0 0
  %1446 = vmatprep.subr.bf16.mxu0 0
  %1447 = vmatpush1.bf16.msra.mxu0 0
  %1448 = vmatprep.subr.bf16.mxu0 0
  %1449 = vmatpush1.bf16.msra.mxu0 0
  %1450 = vmatprep.subr.bf16.mxu0 0
  %1451 = vmatpush1.bf16.msra.mxu0 0
  %1452 = vmatprep.subr.bf16.mxu0 0
  %1453 = vmatpush1.bf16.msra.mxu0 0
  %1454 = vmatprep.subr.bf16.mxu0 0
  %1455 = vmatpush1.bf16.msra.mxu0 0
  %1456 = vmatprep.subr.bf16.mxu0 0
  %1457 = vmatpush1.bf16.msra.mxu0 0
  %1458 = vmatprep.mubr.bf16.mxu0 0
  %1459 = vmatmul.mubr.bf16.gmra.mrb[0].mxu0 %v1424
  %v1460 = vpop.f32.mrb[0].mxu0
  %v1461 = vadd.f32 0.0, %v1460
  %v1462 = vpop.f32.mrb[0].mxu0
  %v1463 = vpop.f32.mrb[0].mxu0
  %v1464 = vpop.f32.mrb[0].mxu0
  %1465 = vdwg.mxu0
  %1466 = vmatprep.subr.bf16.mxu0 0
  %1467 = vmatpush1.bf16.msra.mxu0 %v352
  %1468 = vmatprep.subr.bf16.mxu0 0
  %1469 = vmatpush1.bf16.msra.mxu0 %v353
  %1470 = vmatprep.subr.bf16.mxu0 0
  %1471 = vmatpush1.bf16.msra.mxu0 0
  %1472 = vmatprep.subr.bf16.mxu0 0
  %1473 = vmatpush1.bf16.msra.mxu0 0
  %1474 = vmatprep.subr.bf16.mxu0 0
  %1475 = vmatpush1.bf16.msra.mxu0 0
  %1476 = vmatprep.subr.bf16.mxu0 0
  %1477 = vmatpush1.bf16.msra.mxu0 0
  %1478 = vmatprep.subr.bf16.mxu0 0
  %1479 = vmatpush1.bf16.msra.mxu0 0
  %1480 = vmatprep.subr.bf16.mxu0 0
  %1481 = vmatpush1.bf16.msra.mxu0 0
  %1482 = vmatprep.subr.bf16.mxu0 0
  %1483 = vmatpush1.bf16.msra.mxu0 0
  %1484 = vmatprep.subr.bf16.mxu0 0
  %1485 = vmatpush1.bf16.msra.mxu0 0
  %1486 = vmatprep.subr.bf16.mxu0 0
  %1487 = vmatpush1.bf16.msra.mxu0 0
  %1488 = vmatprep.subr.bf16.mxu0 0
  %1489 = vmatpush1.bf16.msra.mxu0 0
  %1490 = vmatprep.subr.bf16.mxu0 0
  %1491 = vmatpush1.bf16.msra.mxu0 0
  %1492 = vmatprep.subr.bf16.mxu0 0
  %1493 = vmatpush1.bf16.msra.mxu0 0
  %1494 = vmatprep.subr.bf16.mxu0 0
  %1495 = vmatpush1.bf16.msra.mxu0 0
  %1496 = vmatprep.subr.bf16.mxu0 0
  %1497 = vmatpush1.bf16.msra.mxu0 0
  %1498 = vmatprep.mubr.bf16.mxu0 0
  %1499 = vmatmul.mubr.bf16.gmra.mrb[0].mxu0 %v1352
  %v1500 = vpop.f32.mrb[0].mxu0
  %v1501 = vadd.f32 0.0, %v1500
  %v1502 = vpop.f32.mrb[0].mxu0
  %v1503 = vpop.f32.mrb[0].mxu0
  %v1504 = vpop.f32.mrb[0].mxu0
  %1505 = vdwg.mxu0
  %v1506 = vadd.f32 %v138, %v1501
  %v1507 = vadd.f32 %v1506, %v1461
  %v1508 = vxor.u32 %v1507, 2147483648
  %v1509 = vmul.f32 %v1508, 1.442695
  %v1510 = vpow.pop %v1509
  %v1511 = vadd.f32 %v1510, 1.0
  %v1512 = vrcp.pop %v1511
  %v1513 = vmul.f32 1.0, %v1512
  %v1514 = vtanh.pop %v1507
  %v1515 = vmul.f32 %v1513, %v1340
  %1517 = vrot.lane.b32.xlu0 %v1514, 64
  %v1518 = vpop.permute.xlu0 %1517
  %v1520 = vmul.f32 %v1513, %v1518
  %1522 = vrot.lane.b32.xlu0 %v1520, 32
  %v1523 = vpop.permute.xlu0 %1522
  %v1525 = vadd.f32 %v1515, %v1523
  %v1526 = vtanh.pop %v1525
  %1528 = vrot.lane.b32.xlu0 %v1526, 64
  %v1529 = vpop.permute.xlu0 %1528
  %v1531 = vmul.f32 %v1513, %v1529
  %v1532 = vpack.c.bf16 %v1531, %v1531
  %1534 = vrot.lane.b32.xlu0 %v1532, 32
  %v1535 = vpop.permute.xlu0 %1534
  %v1537 = vsel %vm151, %v1535, 0
  %1539 = vmatprep.subr.bf16.mxu0 0
  %1540 = vmatpush1.bf16.msra.mxu0 %v300
  %1541 = vmatprep.subr.bf16.mxu0 0
  %1542 = vmatpush1.bf16.msra.mxu0 %v301
  %1543 = vmatprep.subr.bf16.mxu0 0
  %1544 = vmatpush1.bf16.msra.mxu0 0
  %1545 = vmatprep.subr.bf16.mxu0 0
  %1546 = vmatpush1.bf16.msra.mxu0 0
  %1547 = vmatprep.subr.bf16.mxu0 0
  %1548 = vmatpush1.bf16.msra.mxu0 0
  %1549 = vmatprep.subr.bf16.mxu0 0
  %1550 = vmatpush1.bf16.msra.mxu0 0
  %1551 = vmatprep.subr.bf16.mxu0 0
  %1552 = vmatpush1.bf16.msra.mxu0 0
  %1553 = vmatprep.subr.bf16.mxu0 0
  %1554 = vmatpush1.bf16.msra.mxu0 0
  %1555 = vmatprep.subr.bf16.mxu0 0
  %1556 = vmatpush1.bf16.msra.mxu0 0
  %1557 = vmatprep.subr.bf16.mxu0 0
  %1558 = vmatpush1.bf16.msra.mxu0 0
  %1559 = vmatprep.subr.bf16.mxu0 0
  %1560 = vmatpush1.bf16.msra.mxu0 0
  %1561 = vmatprep.subr.bf16.mxu0 0
  %1562 = vmatpush1.bf16.msra.mxu0 0
  %1563 = vmatprep.subr.bf16.mxu0 0
  %1564 = vmatpush1.bf16.msra.mxu0 0
  %1565 = vmatprep.subr.bf16.mxu0 0
  %1566 = vmatpush1.bf16.msra.mxu0 0
  %1567 = vmatprep.subr.bf16.mxu0 0
  %1568 = vmatpush1.bf16.msra.mxu0 0
  %1569 = vmatprep.subr.bf16.mxu0 0
  %1570 = vmatpush1.bf16.msra.mxu0 0
  %1571 = vmatprep.mubr.bf16.mxu0 0
  %1572 = vmatmul.mubr.bf16.gmra.mrb[0].mxu0 %v1537
  %v1573 = vpop.f32.mrb[0].mxu0
  %v1574 = vadd.f32 0.0, %v1573
  %v1575 = vpop.f32.mrb[0].mxu0
  %v1576 = vpop.f32.mrb[0].mxu0
  %v1577 = vpop.f32.mrb[0].mxu0
  %1578 = vdwg.mxu0
  %v1579 = vpack.c.bf16 %v1418, %v1418
  %1581 = vrot.lane.b32.xlu0 %v1579, 32
  %v1582 = vpop.permute.xlu0 %1581
  %v1584 = vsel %vm151, %v1582, 0
  %1586 = vmatprep.subr.bf16.mxu0 0
  %1587 = vmatpush1.bf16.msra.mxu0 %v352
  %1588 = vmatprep.subr.bf16.mxu0 0
  %1589 = vmatpush1.bf16.msra.mxu0 %v353
  %1590 = vmatprep.subr.bf16.mxu0 0
  %1591 = vmatpush1.bf16.msra.mxu0 0
  %1592 = vmatprep.subr.bf16.mxu0 0
  %1593 = vmatpush1.bf16.msra.mxu0 0
  %1594 = vmatprep.subr.bf16.mxu0 0
  %1595 = vmatpush1.bf16.msra.mxu0 0
  %1596 = vmatprep.subr.bf16.mxu0 0
  %1597 = vmatpush1.bf16.msra.mxu0 0
  %1598 = vmatprep.subr.bf16.mxu0 0
  %1599 = vmatpush1.bf16.msra.mxu0 0
  %1600 = vmatprep.subr.bf16.mxu0 0
  %1601 = vmatpush1.bf16.msra.mxu0 0
  %1602 = vmatprep.subr.bf16.mxu0 0
  %1603 = vmatpush1.bf16.msra.mxu0 0
  %1604 = vmatprep.subr.bf16.mxu0 0
  %1605 = vmatpush1.bf16.msra.mxu0 0
  %1606 = vmatprep.subr.bf16.mxu0 0
  %1607 = vmatpush1.bf16.msra.mxu0 0
  %1608 = vmatprep.subr.bf16.mxu0 0
  %1609 = vmatpush1.bf16.msra.mxu0 0
  %1610 = vmatprep.subr.bf16.mxu0 0
  %1611 = vmatpush1.bf16.msra.mxu0 0
  %1612 = vmatprep.subr.bf16.mxu0 0
  %1613 = vmatpush1.bf16.msra.mxu0 0
  %1614 = vmatprep.subr.bf16.mxu0 0
  %1615 = vmatpush1.bf16.msra.mxu0 0
  %1616 = vmatprep.subr.bf16.mxu0 0
  %1617 = vmatpush1.bf16.msra.mxu0 0
  %1618 = vmatprep.mubr.bf16.mxu0 0
  %1619 = vmatmul.mubr.bf16.gmra.mrb[0].mxu0 %v1584
  %v1620 = vpop.f32.mrb[0].mxu0
  %v1621 = vadd.f32 0.0, %v1620
  %v1622 = vpop.f32.mrb[0].mxu0
  %v1623 = vpop.f32.mrb[0].mxu0
  %v1624 = vpop.f32.mrb[0].mxu0
  %1625 = vdwg.mxu0
  %v1626 = vadd.f32 %v138, %v1621
  %v1627 = vadd.f32 %v1626, %v1574
  %v1628 = vxor.u32 %v1627, 2147483648
  %v1629 = vmul.f32 %v1628, 1.442695
  %v1630 = vpow.pop %v1629
  %v1631 = vadd.f32 %v1630, 1.0
  %v1632 = vrcp.pop %v1631
  %v1633 = vmul.f32 1.0, %v1632
  %v1634 = vtanh.pop %v1627
  %v1635 = vmul.f32 %v1633, %v1525
  %1637 = vrot.lane.b32.xlu0 %v1634, 64
  %v1638 = vpop.permute.xlu0 %1637
  %v1640 = vmul.f32 %v1633, %v1638
  %1642 = vrot.lane.b32.xlu0 %v1640, 32
  %v1643 = vpop.permute.xlu0 %1642
  %v1645 = vadd.f32 %v1635, %v1643
  %v1646 = vtanh.pop %v1645
  %1648 = vrot.lane.b32.xlu0 %v1646, 64
  %v1649 = vpop.permute.xlu0 %1648
  %v1651 = vmul.f32 %v1633, %v1649
  %v1652 = vpack.c.bf16 %v1651, %v1651
  %v1653 = vld [vmem:[%s2 + $0x2] sm:$0x1]
  %v1654 = vlaneseq
  %v1655 = vshrl.u32 %v1654, 7
  %v1656 = vsub.s32 0, %v1655
  %v1657 = vrot.slane %v1653, %v1656
  %1659 = vrot.lane.b32.xlu0 %v1652, 32
  %v1660 = vpop.permute.xlu0 %1659
  %v1665 = vunpack.c.l.b16 %v29
  %v1666 = vunpack.c.l.b16 %v30
  %v1667 = vunpack.c.l.b16 %v31
  %v1668 = vunpack.c.l.b16 %v32
  %v1669 = vpack.c.b16 %v1666, %v1665
  %v1670 = vpack.c.b16 %v1668, %v1667
  %v1674 = vsel %vm151, %v1660, 0
  %1676 = vmatprep.subr.bf16.mxu0 0
  %1677 = vmatpush1.bf16.msra.mxu0 %v1669
  %1678 = vmatprep.subr.bf16.mxu0 0
  %1679 = vmatpush1.bf16.msra.mxu0 %v1670
  %1680 = vmatprep.subr.bf16.mxu0 0
  %1681 = vmatpush1.bf16.msra.mxu0 0
  %1682 = vmatprep.subr.bf16.mxu0 0
  %1683 = vmatpush1.bf16.msra.mxu0 0
  %1684 = vmatprep.subr.bf16.mxu0 0
  %1685 = vmatpush1.bf16.msra.mxu0 0
  %1686 = vmatprep.subr.bf16.mxu0 0
  %1687 = vmatpush1.bf16.msra.mxu0 0
  %1688 = vmatprep.subr.bf16.mxu0 0
  %1689 = vmatpush1.bf16.msra.mxu0 0
  %1690 = vmatprep.subr.bf16.mxu0 0
  %1691 = vmatpush1.bf16.msra.mxu0 0
  %1692 = vmatprep.subr.bf16.mxu0 0
  %1693 = vmatpush1.bf16.msra.mxu0 0
  %1694 = vmatprep.subr.bf16.mxu0 0
  %1695 = vmatpush1.bf16.msra.mxu0 0
  %1696 = vmatprep.subr.bf16.mxu0 0
  %1697 = vmatpush1.bf16.msra.mxu0 0
  %1698 = vmatprep.subr.bf16.mxu0 0
  %1699 = vmatpush1.bf16.msra.mxu0 0
  %1700 = vmatprep.subr.bf16.mxu0 0
  %1701 = vmatpush1.bf16.msra.mxu0 0
  %1702 = vmatprep.subr.bf16.mxu0 0
  %1703 = vmatpush1.bf16.msra.mxu0 0
  %1704 = vmatprep.subr.bf16.mxu0 0
  %1705 = vmatpush1.bf16.msra.mxu0 0
  %1706 = vmatprep.subr.bf16.mxu0 0
  %1707 = vmatpush1.bf16.msra.mxu0 0
  %1708 = vmatprep.mubr.bf16.mxu0 0
  %1709 = vmatmul.mubr.bf16.gmra.mrb[0].mxu0 %v1674
  %v1710 = vpop.f32.mrb[0].mxu0
  %v1711 = vadd.f32 %v1657, %v1710
  %v1712 = vpop.f32.mrb[0].mxu0
  %v1713 = vpop.f32.mrb[0].mxu0
  %v1714 = vpop.f32.mrb[0].mxu0
  %1715 = vdwg.mxu0
  %1716 = vst [vmem:[%s3] sm:$0xff] %v1711
  // Predicated region
  $region14: #{lstm_forward.1} parent=0 // pred_check
    _
  $region15: #{lstm_forward.1} parent=0 // pred_check_branch
    %1718 = sbr.rel (0) target = $region17
  $region16: #{lstm_forward.1} parent=0 // pred_region
    _
  $region17: #{lstm_forward.1} parent=0 // pred_fallthru
    _
  // Predicated region
  $region18: #{lstm_forward.1} parent=0 // pred_check
    _
  $region19: #{lstm_forward.1} parent=0 // pred_check_branch
    %1720 = sbr.rel (0) target = $region21
  $region20: #{lstm_forward.1} parent=0 // pred_region
    _
  $region21: #{lstm_forward.1} parent=0 // pred_fallthru
    _

</llo_original>
